<compile_context>
chip_gen: v7x
topology: tpu7x:2x2x1
jax: 0.10.0
libtpu: 0.0.40
codegen_flags: <defaults>
</compile_context>

<pallas_src>
import functools

import jax
import jax.numpy as jnp
from jax.experimental import pallas as pl
from jax.experimental.pallas import tpu as pltpu


def _capsule_routing_kernel(x_ref, w_ref, out_ref, *, num_iterations):
    # x_ref:   (B, I, R)      features, route nodes on the 128-lane axis
    # w_ref:   (CB, O, I, R)  this step's slab of capsule routing weights
    # out_ref: (CB, B, O)     squashed output vectors (lane-dense store)
    B, I, R = x_ref.shape
    CB = w_ref.shape[0]
    inv_r = 1.0 / float(R)

    x = x_ref[...].astype(jnp.float32)  # loaded once, shared across capsules

    for c in range(CB):
        w_c = w_ref[c].astype(jnp.float32)  # (O, I, R)

        # priors[b, o, r] = sum_i x[b, i, r] * w[o, i, r]
        # Unrolled accumulation over I keeps only the (B, O, R) accumulator live
        # (no 4D broadcast product, no cross-sublane reduce).
        priors = x[:, 0, :][:, None, :] * w_c[:, 0, :][None, :, :]          # (B, O, R)
        for i in range(1, I):
            priors = priors + x[:, i, :][:, None, :] * w_c[:, i, :][None, :, :]

        # Reference logits are constant along O, so the collapsed (B, 1, R) form
        # is exact.
        logits = None
        v = None
        for it in range(num_iterations):
            if it == 0:
                # softmax(all-zero logits) == 1/R exactly; skip max/exp/sum.
                s = jnp.sum(priors, axis=-1) * inv_r                        # (B, O)
            else:
                m = jnp.max(logits, axis=-1, keepdims=True)                 # (B, 1, 1)
                e = jnp.exp(logits - m)                                     # (B, 1, R)
                denom = jnp.sum(e, axis=-1, keepdims=True)                  # (B, 1, 1)
                probs = e * pl.reciprocal(denom, approx=True)               # (B, 1, R)
                s = jnp.sum(probs * priors, axis=-1)                        # (B, O)

            # squash along out_channels: v = s * sqrt(|s|^2) / (1 + |s|^2)
            # (algebraically identical to (sq/(1+sq)) * s / sqrt(sq) for sq > 0)
            sq = jnp.sum(s * s, axis=-1, keepdims=True)                     # (B, 1)
            v = s * jnp.sqrt(sq) * pl.reciprocal(1.0 + sq, approx=True)     # (B, O)

            if it != num_iterations - 1:
                delta = jnp.sum(priors * v[:, :, None], axis=1, keepdims=True)  # (B,1,R)
                logits = delta if logits is None else logits + delta

        out_ref[c] = v.astype(out_ref.dtype)


def prepare_route_weights(route_weights):
    """One-time parameter conversion: (C, R, I, O) -> (C, O, I, R).

    Hoisted out of the jitted forward so the constant transpose does not cost an
    HBM round trip on every call.
    """
    return jnp.transpose(route_weights, (0, 3, 2, 1)).astype(jnp.float32)


@functools.partial(jax.jit, static_argnames=("num_iterations",))
def capsule_layer(x, route_weights_t, num_iterations=3):
    """x: (B, R, I) f32; route_weights_t: (C, O, I, R) f32 (pre-transposed).

    Returns (C, B, 1, 1, O), matching the PyTorch routing-branch output."""
    B, R, I = x.shape
    C, O, Iw, Rw = route_weights_t.shape
    assert (Iw, Rw) == (I, R)

    # Two "parallel" grid steps when possible: negligible overhead on v5e/v6e and
    # lets v7x megacore shard capsules across its two TensorCores.
    num_steps = 2 if (C % 2 == 0 and C >= 2) else 1
    CB = C // num_steps

    # Layout plumbing for x stays here (it depends on the activation); route nodes R
    # go on the 128-lane axis, tiny channel dims on sublanes/leading.
    x_t = jnp.transpose(x, (0, 2, 1)).astype(jnp.float32)                   # (B, I, R)

    kernel = functools.partial(_capsule_routing_kernel, num_iterations=num_iterations)

    flops = 2 * C * B * R * I * O + num_iterations * 6 * C * B * R * O
    bytes_accessed = 4 * (B * I * R + C * O * I * R + C * B * O)

    out = pl.pallas_call(
        kernel,
        out_shape=jax.ShapeDtypeStruct((C, B, O), jnp.float32),             # lane-dense
        grid=(num_steps,),
        in_specs=[
            # Features: same block every step -> stays resident in VMEM.
            pl.BlockSpec((B, I, R), lambda g: (0, 0, 0)),
            # CB capsules' weight slab per grid step (double-buffered by Pallas).
            pl.BlockSpec((CB, O, I, R), lambda g: (g, 0, 0, 0)),
        ],
        out_specs=pl.BlockSpec((CB, B, O), lambda g: (g, 0, 0)),
        compiler_params=pltpu.CompilerParams(
            dimension_semantics=("parallel",),
            vmem_limit_bytes=32 * 1024 * 1024,  # v5e default scoped VMEM is only 16 MiB
        ),
        cost_estimate=pl.CostEstimate(
            flops=flops,
            transcendentals=max(num_iterations - 1, 0) * C * B * R,
            bytes_accessed=bytes_accessed,
        ),
    )(x_t, route_weights_t)

    return out.reshape(C, B, 1, 1, O)


def capsule_layer_ref(x, route_weights, num_iterations=3):
    """Pure-JAX mirror of the PyTorch forward (routing branch)."""
    priors = jnp.matmul(x[None, :, :, None, :],
                        route_weights[:, None, :, :, :])                    # (C,B,R,1,O)
    logits = jnp.zeros(priors.shape, jnp.float32)
    outputs = None
    for i in range(num_iterations):
        probs = jax.nn.softmax(logits, axis=2)
        s = jnp.sum(probs * priors, axis=2, keepdims=True)                  # (C,B,1,1,O)
        sq = jnp.sum(s * s, axis=-1, keepdims=True)
        outputs = s * (sq / (1.0 + sq)) / jnp.sqrt(sq)
        if i != num_iterations - 1:
            delta = jnp.sum(priors * outputs, axis=-1, keepdims=True)
            logits = logits + delta
    return outputs                                                          # (C,B,1,1,O)


if __name__ == "__main__":
    key = jax.random.PRNGKey(0)
    # Small shapes consistent with the module (routing branch):
    B = 2        # batch
    R = 128      # num_route_nodes (lane-aligned)
    I = 8        # in_channels
    O = 16       # out_channels
    C = 4        # num_capsules
    num_iterations = 3

    k1, k2 = jax.random.split(key)
    x = jax.random.normal(k1, (B, R, I), dtype=jnp.float32)
    route_weights = jax.random.normal(k2, (C, R, I, O), dtype=jnp.float32)

    # One-time parameter conversion (hoisted out of the hot forward path).
    route_weights_t = jax.block_until_ready(prepare_route_weights(route_weights))

    out = capsule_layer(x, route_weights_t, num_iterations=num_iterations)
    out = jax.block_until_ready(out)

    ref = capsule_layer_ref(x, route_weights, num_iterations)
    assert out.shape == ref.shape == (C, B, 1, 1, O), (out.shape, ref.shape)
    # approx-reciprocal (EUP) softmax/squash -> slightly looser tolerance than exact divide.
    assert jnp.allclose(out, ref, rtol=5e-3, atol=5e-3), float(jnp.max(jnp.abs(out - ref)))

    print("KERNEL_OK")
</pallas_src>

<mosaic_0001>
module attributes {stable_mosaic.version = 11 : i64} {
  func.func @_capsule_routing_kernel(%arg0: i32, %arg1: memref<2x8x128xf32, #tpu.memory_space<vmem>>, %arg2: memref<2x16x8x128xf32, #tpu.memory_space<vmem>>, %arg3: memref<2x2x16xf32, #tpu.memory_space<vmem>>) attributes {dimension_semantics = [#tpu.dimension_semantics<parallel>], iteration_bounds = array<i64: 2>, scalar_prefetch = 0 : i64, scratch_operands = 0 : i64, tpu.core_type = #tpu.core_type<tc>, window_params = [{pipeline_mode = #tpu.pipeline_mode<synchronous>, transform_indices = @transform_0, window_bounds = array<i64: 2, 8, 128>}, {transform_indices = @transform_1, window_bounds = array<i64: 2, 16, 8, 128>}, {transform_indices = @transform_2, window_bounds = array<i64: 2, 2, 16>}]} {
    %c0 = arith.constant 0 : index
    %c0_0 = arith.constant 0 : index
    %c0_1 = arith.constant 0 : index
    %0 = vector.load %arg1[%c0, %c0_0, %c0_1] : memref<2x8x128xf32, #tpu.memory_space<vmem>>, vector<2x8x128xf32>
    %c0_2 = arith.constant 0 : index
    %c0_3 = arith.constant 0 : index
    %c0_4 = arith.constant 0 : index
    %c0_5 = arith.constant 0 : index
    %1 = vector.load %arg2[%c0_2, %c0_3, %c0_4, %c0_5] : memref<2x16x8x128xf32, #tpu.memory_space<vmem>>, vector<1x16x8x128xf32>
    %2 = vector.shape_cast %1 : vector<1x16x8x128xf32> to vector<16x8x128xf32>
    %3 = vector.extract_strided_slice %0 {offsets = [0, 0, 0], sizes = [2, 1, 128], strides = [1, 1, 1]} : vector<2x8x128xf32> to vector<2x1x128xf32>
    %4 = vector.shape_cast %3 : vector<2x1x128xf32> to vector<2x128xf32>
    %5 = vector.shape_cast %4 : vector<2x128xf32> to vector<2x1x128xf32>
    %6 = vector.extract_strided_slice %2 {offsets = [0, 0, 0], sizes = [16, 1, 128], strides = [1, 1, 1]} : vector<16x8x128xf32> to vector<16x1x128xf32>
    %7 = vector.shape_cast %6 : vector<16x1x128xf32> to vector<16x128xf32>
    %8 = vector.shape_cast %7 : vector<16x128xf32> to vector<1x16x128xf32>
    %9 = vector.broadcast %5 : vector<2x1x128xf32> to vector<2x16x128xf32>
    %10 = vector.broadcast %8 : vector<1x16x128xf32> to vector<2x16x128xf32>
    %11 = arith.mulf %9, %10 : vector<2x16x128xf32>
    %12 = vector.extract_strided_slice %0 {offsets = [0, 1, 0], sizes = [2, 1, 128], strides = [1, 1, 1]} : vector<2x8x128xf32> to vector<2x1x128xf32>
    %13 = vector.shape_cast %12 : vector<2x1x128xf32> to vector<2x128xf32>
    %14 = vector.shape_cast %13 : vector<2x128xf32> to vector<2x1x128xf32>
    %15 = vector.extract_strided_slice %2 {offsets = [0, 1, 0], sizes = [16, 1, 128], strides = [1, 1, 1]} : vector<16x8x128xf32> to vector<16x1x128xf32>
    %16 = vector.shape_cast %15 : vector<16x1x128xf32> to vector<16x128xf32>
    %17 = vector.shape_cast %16 : vector<16x128xf32> to vector<1x16x128xf32>
    %18 = vector.broadcast %14 : vector<2x1x128xf32> to vector<2x16x128xf32>
    %19 = vector.broadcast %17 : vector<1x16x128xf32> to vector<2x16x128xf32>
    %20 = arith.mulf %18, %19 : vector<2x16x128xf32>
    %21 = arith.addf %11, %20 : vector<2x16x128xf32>
    %22 = vector.extract_strided_slice %0 {offsets = [0, 2, 0], sizes = [2, 1, 128], strides = [1, 1, 1]} : vector<2x8x128xf32> to vector<2x1x128xf32>
    %23 = vector.shape_cast %22 : vector<2x1x128xf32> to vector<2x128xf32>
    %24 = vector.shape_cast %23 : vector<2x128xf32> to vector<2x1x128xf32>
    %25 = vector.extract_strided_slice %2 {offsets = [0, 2, 0], sizes = [16, 1, 128], strides = [1, 1, 1]} : vector<16x8x128xf32> to vector<16x1x128xf32>
    %26 = vector.shape_cast %25 : vector<16x1x128xf32> to vector<16x128xf32>
    %27 = vector.shape_cast %26 : vector<16x128xf32> to vector<1x16x128xf32>
    %28 = vector.broadcast %24 : vector<2x1x128xf32> to vector<2x16x128xf32>
    %29 = vector.broadcast %27 : vector<1x16x128xf32> to vector<2x16x128xf32>
    %30 = arith.mulf %28, %29 : vector<2x16x128xf32>
    %31 = arith.addf %21, %30 : vector<2x16x128xf32>
    %32 = vector.extract_strided_slice %0 {offsets = [0, 3, 0], sizes = [2, 1, 128], strides = [1, 1, 1]} : vector<2x8x128xf32> to vector<2x1x128xf32>
    %33 = vector.shape_cast %32 : vector<2x1x128xf32> to vector<2x128xf32>
    %34 = vector.shape_cast %33 : vector<2x128xf32> to vector<2x1x128xf32>
    %35 = vector.extract_strided_slice %2 {offsets = [0, 3, 0], sizes = [16, 1, 128], strides = [1, 1, 1]} : vector<16x8x128xf32> to vector<16x1x128xf32>
    %36 = vector.shape_cast %35 : vector<16x1x128xf32> to vector<16x128xf32>
    %37 = vector.shape_cast %36 : vector<16x128xf32> to vector<1x16x128xf32>
    %38 = vector.broadcast %34 : vector<2x1x128xf32> to vector<2x16x128xf32>
    %39 = vector.broadcast %37 : vector<1x16x128xf32> to vector<2x16x128xf32>
    %40 = arith.mulf %38, %39 : vector<2x16x128xf32>
    %41 = arith.addf %31, %40 : vector<2x16x128xf32>
    %42 = vector.extract_strided_slice %0 {offsets = [0, 4, 0], sizes = [2, 1, 128], strides = [1, 1, 1]} : vector<2x8x128xf32> to vector<2x1x128xf32>
    %43 = vector.shape_cast %42 : vector<2x1x128xf32> to vector<2x128xf32>
    %44 = vector.shape_cast %43 : vector<2x128xf32> to vector<2x1x128xf32>
    %45 = vector.extract_strided_slice %2 {offsets = [0, 4, 0], sizes = [16, 1, 128], strides = [1, 1, 1]} : vector<16x8x128xf32> to vector<16x1x128xf32>
    %46 = vector.shape_cast %45 : vector<16x1x128xf32> to vector<16x128xf32>
    %47 = vector.shape_cast %46 : vector<16x128xf32> to vector<1x16x128xf32>
    %48 = vector.broadcast %44 : vector<2x1x128xf32> to vector<2x16x128xf32>
    %49 = vector.broadcast %47 : vector<1x16x128xf32> to vector<2x16x128xf32>
    %50 = arith.mulf %48, %49 : vector<2x16x128xf32>
    %51 = arith.addf %41, %50 : vector<2x16x128xf32>
    %52 = vector.extract_strided_slice %0 {offsets = [0, 5, 0], sizes = [2, 1, 128], strides = [1, 1, 1]} : vector<2x8x128xf32> to vector<2x1x128xf32>
    %53 = vector.shape_cast %52 : vector<2x1x128xf32> to vector<2x128xf32>
    %54 = vector.shape_cast %53 : vector<2x128xf32> to vector<2x1x128xf32>
    %55 = vector.extract_strided_slice %2 {offsets = [0, 5, 0], sizes = [16, 1, 128], strides = [1, 1, 1]} : vector<16x8x128xf32> to vector<16x1x128xf32>
    %56 = vector.shape_cast %55 : vector<16x1x128xf32> to vector<16x128xf32>
    %57 = vector.shape_cast %56 : vector<16x128xf32> to vector<1x16x128xf32>
    %58 = vector.broadcast %54 : vector<2x1x128xf32> to vector<2x16x128xf32>
    %59 = vector.broadcast %57 : vector<1x16x128xf32> to vector<2x16x128xf32>
    %60 = arith.mulf %58, %59 : vector<2x16x128xf32>
    %61 = arith.addf %51, %60 : vector<2x16x128xf32>
    %62 = vector.extract_strided_slice %0 {offsets = [0, 6, 0], sizes = [2, 1, 128], strides = [1, 1, 1]} : vector<2x8x128xf32> to vector<2x1x128xf32>
    %63 = vector.shape_cast %62 : vector<2x1x128xf32> to vector<2x128xf32>
    %64 = vector.shape_cast %63 : vector<2x128xf32> to vector<2x1x128xf32>
    %65 = vector.extract_strided_slice %2 {offsets = [0, 6, 0], sizes = [16, 1, 128], strides = [1, 1, 1]} : vector<16x8x128xf32> to vector<16x1x128xf32>
    %66 = vector.shape_cast %65 : vector<16x1x128xf32> to vector<16x128xf32>
    %67 = vector.shape_cast %66 : vector<16x128xf32> to vector<1x16x128xf32>
    %68 = vector.broadcast %64 : vector<2x1x128xf32> to vector<2x16x128xf32>
    %69 = vector.broadcast %67 : vector<1x16x128xf32> to vector<2x16x128xf32>
    %70 = arith.mulf %68, %69 : vector<2x16x128xf32>
    %71 = arith.addf %61, %70 : vector<2x16x128xf32>
    %72 = vector.extract_strided_slice %0 {offsets = [0, 7, 0], sizes = [2, 1, 128], strides = [1, 1, 1]} : vector<2x8x128xf32> to vector<2x1x128xf32>
    %73 = vector.shape_cast %72 : vector<2x1x128xf32> to vector<2x128xf32>
    %74 = vector.shape_cast %73 : vector<2x128xf32> to vector<2x1x128xf32>
    %75 = vector.extract_strided_slice %2 {offsets = [0, 7, 0], sizes = [16, 1, 128], strides = [1, 1, 1]} : vector<16x8x128xf32> to vector<16x1x128xf32>
    %76 = vector.shape_cast %75 : vector<16x1x128xf32> to vector<16x128xf32>
    %77 = vector.shape_cast %76 : vector<16x128xf32> to vector<1x16x128xf32>
    %78 = vector.broadcast %74 : vector<2x1x128xf32> to vector<2x16x128xf32>
    %79 = vector.broadcast %77 : vector<1x16x128xf32> to vector<2x16x128xf32>
    %80 = arith.mulf %78, %79 : vector<2x16x128xf32>
    %81 = arith.addf %71, %80 : vector<2x16x128xf32>
    %cst = arith.constant dense<0.000000e+00> : vector<2x16xf32>
    %82 = vector.multi_reduction <add>, %81, %cst [2] : vector<2x16x128xf32> to vector<2x16xf32>
    %cst_6 = arith.constant 7.812500e-03 : f32
    %83 = vector.broadcast %cst_6 : f32 to vector<2x16xf32>
    %84 = arith.mulf %82, %83 : vector<2x16xf32>
    %85 = arith.mulf %84, %84 : vector<2x16xf32>
    %cst_7 = arith.constant dense<0.000000e+00> : vector<2xf32>
    %86 = vector.multi_reduction <add>, %85, %cst_7 [1] : vector<2x16xf32> to vector<2xf32>
    %87 = vector.shape_cast %86 : vector<2xf32> to vector<2x1xf32>
    %88 = math.sqrt %87 : vector<2x1xf32>
    %89 = vector.broadcast %88 : vector<2x1xf32> to vector<2x16xf32>
    %90 = arith.mulf %84, %89 : vector<2x16xf32>
    %cst_8 = arith.constant 1.000000e+00 : f32
    %91 = vector.broadcast %cst_8 : f32 to vector<2x1xf32>
    %92 = arith.addf %91, %87 : vector<2x1xf32>
    %93 = tpu.reciprocal %92 {approx = true} : vector<2x1xf32> -> vector<2x1xf32>
    %94 = vector.broadcast %93 : vector<2x1xf32> to vector<2x16xf32>
    %95 = arith.mulf %90, %94 : vector<2x16xf32>
    %96 = vector.shape_cast %95 : vector<2x16xf32> to vector<2x16x1xf32>
    %97 = vector.broadcast %96 : vector<2x16x1xf32> to vector<2x16x128xf32>
    %98 = arith.mulf %81, %97 : vector<2x16x128xf32>
    %cst_9 = arith.constant dense<0.000000e+00> : vector<2x128xf32>
    %99 = vector.multi_reduction <add>, %98, %cst_9 [1] : vector<2x16x128xf32> to vector<2x128xf32>
    %100 = vector.shape_cast %99 : vector<2x128xf32> to vector<2x1x128xf32>
    %cst_10 = arith.constant dense<0xFF800000> : vector<2x1xf32>
    %101 = vector.multi_reduction <maximumf>, %100, %cst_10 [2] : vector<2x1x128xf32> to vector<2x1xf32>
    %102 = vector.shape_cast %101 : vector<2x1xf32> to vector<2x1x1xf32>
    %103 = vector.broadcast %102 : vector<2x1x1xf32> to vector<2x1x128xf32>
    %104 = arith.subf %100, %103 : vector<2x1x128xf32>
    %105 = math.exp %104 : vector<2x1x128xf32>
    %cst_11 = arith.constant dense<0.000000e+00> : vector<2x1xf32>
    %106 = vector.multi_reduction <add>, %105, %cst_11 [2] : vector<2x1x128xf32> to vector<2x1xf32>
    %107 = vector.shape_cast %106 : vector<2x1xf32> to vector<2x1x1xf32>
    %108 = tpu.reciprocal %107 {approx = true} : vector<2x1x1xf32> -> vector<2x1x1xf32>
    %109 = vector.broadcast %108 : vector<2x1x1xf32> to vector<2x1x128xf32>
    %110 = arith.mulf %105, %109 : vector<2x1x128xf32>
    %111 = vector.broadcast %110 : vector<2x1x128xf32> to vector<2x16x128xf32>
    %112 = arith.mulf %111, %81 : vector<2x16x128xf32>
    %cst_12 = arith.constant dense<0.000000e+00> : vector<2x16xf32>
    %113 = vector.multi_reduction <add>, %112, %cst_12 [2] : vector<2x16x128xf32> to vector<2x16xf32>
    %114 = arith.mulf %113, %113 : vector<2x16xf32>
    %cst_13 = arith.constant dense<0.000000e+00> : vector<2xf32>
    %115 = vector.multi_reduction <add>, %114, %cst_13 [1] : vector<2x16xf32> to vector<2xf32>
    %116 = vector.shape_cast %115 : vector<2xf32> to vector<2x1xf32>
    %117 = math.sqrt %116 : vector<2x1xf32>
    %118 = vector.broadcast %117 : vector<2x1xf32> to vector<2x16xf32>
    %119 = arith.mulf %113, %118 : vector<2x16xf32>
    %cst_14 = arith.constant 1.000000e+00 : f32
    %120 = vector.broadcast %cst_14 : f32 to vector<2x1xf32>
    %121 = arith.addf %120, %116 : vector<2x1xf32>
    %122 = tpu.reciprocal %121 {approx = true} : vector<2x1xf32> -> vector<2x1xf32>
    %123 = vector.broadcast %122 : vector<2x1xf32> to vector<2x16xf32>
    %124 = arith.mulf %119, %123 : vector<2x16xf32>
    %125 = vector.shape_cast %124 : vector<2x16xf32> to vector<2x16x1xf32>
    %126 = vector.broadcast %125 : vector<2x16x1xf32> to vector<2x16x128xf32>
    %127 = arith.mulf %81, %126 : vector<2x16x128xf32>
    %cst_15 = arith.constant dense<0.000000e+00> : vector<2x128xf32>
    %128 = vector.multi_reduction <add>, %127, %cst_15 [1] : vector<2x16x128xf32> to vector<2x128xf32>
    %129 = vector.shape_cast %128 : vector<2x128xf32> to vector<2x1x128xf32>
    %130 = arith.addf %100, %129 : vector<2x1x128xf32>
    %cst_16 = arith.constant dense<0xFF800000> : vector<2x1xf32>
    %131 = vector.multi_reduction <maximumf>, %130, %cst_16 [2] : vector<2x1x128xf32> to vector<2x1xf32>
    %132 = vector.shape_cast %131 : vector<2x1xf32> to vector<2x1x1xf32>
    %133 = vector.broadcast %132 : vector<2x1x1xf32> to vector<2x1x128xf32>
    %134 = arith.subf %130, %133 : vector<2x1x128xf32>
    %135 = math.exp %134 : vector<2x1x128xf32>
    %cst_17 = arith.constant dense<0.000000e+00> : vector<2x1xf32>
    %136 = vector.multi_reduction <add>, %135, %cst_17 [2] : vector<2x1x128xf32> to vector<2x1xf32>
    %137 = vector.shape_cast %136 : vector<2x1xf32> to vector<2x1x1xf32>
    %138 = tpu.reciprocal %137 {approx = true} : vector<2x1x1xf32> -> vector<2x1x1xf32>
    %139 = vector.broadcast %138 : vector<2x1x1xf32> to vector<2x1x128xf32>
    %140 = arith.mulf %135, %139 : vector<2x1x128xf32>
    %141 = vector.broadcast %140 : vector<2x1x128xf32> to vector<2x16x128xf32>
    %142 = arith.mulf %141, %81 : vector<2x16x128xf32>
    %cst_18 = arith.constant dense<0.000000e+00> : vector<2x16xf32>
    %143 = vector.multi_reduction <add>, %142, %cst_18 [2] : vector<2x16x128xf32> to vector<2x16xf32>
    %144 = arith.mulf %143, %143 : vector<2x16xf32>
    %cst_19 = arith.constant dense<0.000000e+00> : vector<2xf32>
    %145 = vector.multi_reduction <add>, %144, %cst_19 [1] : vector<2x16xf32> to vector<2xf32>
    %146 = vector.shape_cast %145 : vector<2xf32> to vector<2x1xf32>
    %147 = math.sqrt %146 : vector<2x1xf32>
    %148 = vector.broadcast %147 : vector<2x1xf32> to vector<2x16xf32>
    %149 = arith.mulf %143, %148 : vector<2x16xf32>
    %cst_20 = arith.constant 1.000000e+00 : f32
    %150 = vector.broadcast %cst_20 : f32 to vector<2x1xf32>
    %151 = arith.addf %150, %146 : vector<2x1xf32>
    %152 = tpu.reciprocal %151 {approx = true} : vector<2x1xf32> -> vector<2x1xf32>
    %153 = vector.broadcast %152 : vector<2x1xf32> to vector<2x16xf32>
    %154 = arith.mulf %149, %153 : vector<2x16xf32>
    %c0_21 = arith.constant 0 : index
    %c0_22 = arith.constant 0 : index
    %c0_23 = arith.constant 0 : index
    %155 = vector.load %arg3[%c0_21, %c0_22, %c0_23] : memref<2x2x16xf32, #tpu.memory_space<vmem>>, vector<1x2x16xf32>
    %156 = vector.shape_cast %155 : vector<1x2x16xf32> to vector<2x16xf32>
    %157 = vector.shape_cast %154 : vector<2x16xf32> to vector<1x2x16xf32>
    tpu.vector_store %arg3[%c0_21, %c0_22, %c0_23], %157 {strides = array<i32>} : memref<2x2x16xf32, #tpu.memory_space<vmem>>, vector<1x2x16xf32>,
    %c1 = arith.constant 1 : index
    %c0_24 = arith.constant 0 : index
    %c0_25 = arith.constant 0 : index
    %c0_26 = arith.constant 0 : index
    %158 = vector.load %arg2[%c1, %c0_24, %c0_25, %c0_26] : memref<2x16x8x128xf32, #tpu.memory_space<vmem>>, vector<1x16x8x128xf32>
    %159 = vector.shape_cast %158 : vector<1x16x8x128xf32> to vector<16x8x128xf32>
    %160 = vector.extract_strided_slice %0 {offsets = [0, 0, 0], sizes = [2, 1, 128], strides = [1, 1, 1]} : vector<2x8x128xf32> to vector<2x1x128xf32>
    %161 = vector.shape_cast %160 : vector<2x1x128xf32> to vector<2x128xf32>
    %162 = vector.shape_cast %161 : vector<2x128xf32> to vector<2x1x128xf32>
    %163 = vector.extract_strided_slice %159 {offsets = [0, 0, 0], sizes = [16, 1, 128], strides = [1, 1, 1]} : vector<16x8x128xf32> to vector<16x1x128xf32>
    %164 = vector.shape_cast %163 : vector<16x1x128xf32> to vector<16x128xf32>
    %165 = vector.shape_cast %164 : vector<16x128xf32> to vector<1x16x128xf32>
    %166 = vector.broadcast %162 : vector<2x1x128xf32> to vector<2x16x128xf32>
    %167 = vector.broadcast %165 : vector<1x16x128xf32> to vector<2x16x128xf32>
    %168 = arith.mulf %166, %167 : vector<2x16x128xf32>
    %169 = vector.extract_strided_slice %0 {offsets = [0, 1, 0], sizes = [2, 1, 128], strides = [1, 1, 1]} : vector<2x8x128xf32> to vector<2x1x128xf32>
    %170 = vector.shape_cast %169 : vector<2x1x128xf32> to vector<2x128xf32>
    %171 = vector.shape_cast %170 : vector<2x128xf32> to vector<2x1x128xf32>
    %172 = vector.extract_strided_slice %159 {offsets = [0, 1, 0], sizes = [16, 1, 128], strides = [1, 1, 1]} : vector<16x8x128xf32> to vector<16x1x128xf32>
    %173 = vector.shape_cast %172 : vector<16x1x128xf32> to vector<16x128xf32>
    %174 = vector.shape_cast %173 : vector<16x128xf32> to vector<1x16x128xf32>
    %175 = vector.broadcast %171 : vector<2x1x128xf32> to vector<2x16x128xf32>
    %176 = vector.broadcast %174 : vector<1x16x128xf32> to vector<2x16x128xf32>
    %177 = arith.mulf %175, %176 : vector<2x16x128xf32>
    %178 = arith.addf %168, %177 : vector<2x16x128xf32>
    %179 = vector.extract_strided_slice %0 {offsets = [0, 2, 0], sizes = [2, 1, 128], strides = [1, 1, 1]} : vector<2x8x128xf32> to vector<2x1x128xf32>
    %180 = vector.shape_cast %179 : vector<2x1x128xf32> to vector<2x128xf32>
    %181 = vector.shape_cast %180 : vector<2x128xf32> to vector<2x1x128xf32>
    %182 = vector.extract_strided_slice %159 {offsets = [0, 2, 0], sizes = [16, 1, 128], strides = [1, 1, 1]} : vector<16x8x128xf32> to vector<16x1x128xf32>
    %183 = vector.shape_cast %182 : vector<16x1x128xf32> to vector<16x128xf32>
    %184 = vector.shape_cast %183 : vector<16x128xf32> to vector<1x16x128xf32>
    %185 = vector.broadcast %181 : vector<2x1x128xf32> to vector<2x16x128xf32>
    %186 = vector.broadcast %184 : vector<1x16x128xf32> to vector<2x16x128xf32>
    %187 = arith.mulf %185, %186 : vector<2x16x128xf32>
    %188 = arith.addf %178, %187 : vector<2x16x128xf32>
    %189 = vector.extract_strided_slice %0 {offsets = [0, 3, 0], sizes = [2, 1, 128], strides = [1, 1, 1]} : vector<2x8x128xf32> to vector<2x1x128xf32>
    %190 = vector.shape_cast %189 : vector<2x1x128xf32> to vector<2x128xf32>
    %191 = vector.shape_cast %190 : vector<2x128xf32> to vector<2x1x128xf32>
    %192 = vector.extract_strided_slice %159 {offsets = [0, 3, 0], sizes = [16, 1, 128], strides = [1, 1, 1]} : vector<16x8x128xf32> to vector<16x1x128xf32>
    %193 = vector.shape_cast %192 : vector<16x1x128xf32> to vector<16x128xf32>
    %194 = vector.shape_cast %193 : vector<16x128xf32> to vector<1x16x128xf32>
    %195 = vector.broadcast %191 : vector<2x1x128xf32> to vector<2x16x128xf32>
    %196 = vector.broadcast %194 : vector<1x16x128xf32> to vector<2x16x128xf32>
    %197 = arith.mulf %195, %196 : vector<2x16x128xf32>
    %198 = arith.addf %188, %197 : vector<2x16x128xf32>
    %199 = vector.extract_strided_slice %0 {offsets = [0, 4, 0], sizes = [2, 1, 128], strides = [1, 1, 1]} : vector<2x8x128xf32> to vector<2x1x128xf32>
    %200 = vector.shape_cast %199 : vector<2x1x128xf32> to vector<2x128xf32>
    %201 = vector.shape_cast %200 : vector<2x128xf32> to vector<2x1x128xf32>
    %202 = vector.extract_strided_slice %159 {offsets = [0, 4, 0], sizes = [16, 1, 128], strides = [1, 1, 1]} : vector<16x8x128xf32> to vector<16x1x128xf32>
    %203 = vector.shape_cast %202 : vector<16x1x128xf32> to vector<16x128xf32>
    %204 = vector.shape_cast %203 : vector<16x128xf32> to vector<1x16x128xf32>
    %205 = vector.broadcast %201 : vector<2x1x128xf32> to vector<2x16x128xf32>
    %206 = vector.broadcast %204 : vector<1x16x128xf32> to vector<2x16x128xf32>
    %207 = arith.mulf %205, %206 : vector<2x16x128xf32>
    %208 = arith.addf %198, %207 : vector<2x16x128xf32>
    %209 = vector.extract_strided_slice %0 {offsets = [0, 5, 0], sizes = [2, 1, 128], strides = [1, 1, 1]} : vector<2x8x128xf32> to vector<2x1x128xf32>
    %210 = vector.shape_cast %209 : vector<2x1x128xf32> to vector<2x128xf32>
    %211 = vector.shape_cast %210 : vector<2x128xf32> to vector<2x1x128xf32>
    %212 = vector.extract_strided_slice %159 {offsets = [0, 5, 0], sizes = [16, 1, 128], strides = [1, 1, 1]} : vector<16x8x128xf32> to vector<16x1x128xf32>
    %213 = vector.shape_cast %212 : vector<16x1x128xf32> to vector<16x128xf32>
    %214 = vector.shape_cast %213 : vector<16x128xf32> to vector<1x16x128xf32>
    %215 = vector.broadcast %211 : vector<2x1x128xf32> to vector<2x16x128xf32>
    %216 = vector.broadcast %214 : vector<1x16x128xf32> to vector<2x16x128xf32>
    %217 = arith.mulf %215, %216 : vector<2x16x128xf32>
    %218 = arith.addf %208, %217 : vector<2x16x128xf32>
    %219 = vector.extract_strided_slice %0 {offsets = [0, 6, 0], sizes = [2, 1, 128], strides = [1, 1, 1]} : vector<2x8x128xf32> to vector<2x1x128xf32>
    %220 = vector.shape_cast %219 : vector<2x1x128xf32> to vector<2x128xf32>
    %221 = vector.shape_cast %220 : vector<2x128xf32> to vector<2x1x128xf32>
    %222 = vector.extract_strided_slice %159 {offsets = [0, 6, 0], sizes = [16, 1, 128], strides = [1, 1, 1]} : vector<16x8x128xf32> to vector<16x1x128xf32>
    %223 = vector.shape_cast %222 : vector<16x1x128xf32> to vector<16x128xf32>
    %224 = vector.shape_cast %223 : vector<16x128xf32> to vector<1x16x128xf32>
    %225 = vector.broadcast %221 : vector<2x1x128xf32> to vector<2x16x128xf32>
    %226 = vector.broadcast %224 : vector<1x16x128xf32> to vector<2x16x128xf32>
    %227 = arith.mulf %225, %226 : vector<2x16x128xf32>
    %228 = arith.addf %218, %227 : vector<2x16x128xf32>
    %229 = vector.extract_strided_slice %0 {offsets = [0, 7, 0], sizes = [2, 1, 128], strides = [1, 1, 1]} : vector<2x8x128xf32> to vector<2x1x128xf32>
    %230 = vector.shape_cast %229 : vector<2x1x128xf32> to vector<2x128xf32>
    %231 = vector.shape_cast %230 : vector<2x128xf32> to vector<2x1x128xf32>
    %232 = vector.extract_strided_slice %159 {offsets = [0, 7, 0], sizes = [16, 1, 128], strides = [1, 1, 1]} : vector<16x8x128xf32> to vector<16x1x128xf32>
    %233 = vector.shape_cast %232 : vector<16x1x128xf32> to vector<16x128xf32>
    %234 = vector.shape_cast %233 : vector<16x128xf32> to vector<1x16x128xf32>
    %235 = vector.broadcast %231 : vector<2x1x128xf32> to vector<2x16x128xf32>
    %236 = vector.broadcast %234 : vector<1x16x128xf32> to vector<2x16x128xf32>
    %237 = arith.mulf %235, %236 : vector<2x16x128xf32>
    %238 = arith.addf %228, %237 : vector<2x16x128xf32>
    %cst_27 = arith.constant dense<0.000000e+00> : vector<2x16xf32>
    %239 = vector.multi_reduction <add>, %238, %cst_27 [2] : vector<2x16x128xf32> to vector<2x16xf32>
    %cst_28 = arith.constant 7.812500e-03 : f32
    %240 = vector.broadcast %cst_28 : f32 to vector<2x16xf32>
    %241 = arith.mulf %239, %240 : vector<2x16xf32>
    %242 = arith.mulf %241, %241 : vector<2x16xf32>
    %cst_29 = arith.constant dense<0.000000e+00> : vector<2xf32>
    %243 = vector.multi_reduction <add>, %242, %cst_29 [1] : vector<2x16xf32> to vector<2xf32>
    %244 = vector.shape_cast %243 : vector<2xf32> to vector<2x1xf32>
    %245 = math.sqrt %244 : vector<2x1xf32>
    %246 = vector.broadcast %245 : vector<2x1xf32> to vector<2x16xf32>
    %247 = arith.mulf %241, %246 : vector<2x16xf32>
    %cst_30 = arith.constant 1.000000e+00 : f32
    %248 = vector.broadcast %cst_30 : f32 to vector<2x1xf32>
    %249 = arith.addf %248, %244 : vector<2x1xf32>
    %250 = tpu.reciprocal %249 {approx = true} : vector<2x1xf32> -> vector<2x1xf32>
    %251 = vector.broadcast %250 : vector<2x1xf32> to vector<2x16xf32>
    %252 = arith.mulf %247, %251 : vector<2x16xf32>
    %253 = vector.shape_cast %252 : vector<2x16xf32> to vector<2x16x1xf32>
    %254 = vector.broadcast %253 : vector<2x16x1xf32> to vector<2x16x128xf32>
    %255 = arith.mulf %238, %254 : vector<2x16x128xf32>
    %cst_31 = arith.constant dense<0.000000e+00> : vector<2x128xf32>
    %256 = vector.multi_reduction <add>, %255, %cst_31 [1] : vector<2x16x128xf32> to vector<2x128xf32>
    %257 = vector.shape_cast %256 : vector<2x128xf32> to vector<2x1x128xf32>
    %cst_32 = arith.constant dense<0xFF800000> : vector<2x1xf32>
    %258 = vector.multi_reduction <maximumf>, %257, %cst_32 [2] : vector<2x1x128xf32> to vector<2x1xf32>
    %259 = vector.shape_cast %258 : vector<2x1xf32> to vector<2x1x1xf32>
    %260 = vector.broadcast %259 : vector<2x1x1xf32> to vector<2x1x128xf32>
    %261 = arith.subf %257, %260 : vector<2x1x128xf32>
    %262 = math.exp %261 : vector<2x1x128xf32>
    %cst_33 = arith.constant dense<0.000000e+00> : vector<2x1xf32>
    %263 = vector.multi_reduction <add>, %262, %cst_33 [2] : vector<2x1x128xf32> to vector<2x1xf32>
    %264 = vector.shape_cast %263 : vector<2x1xf32> to vector<2x1x1xf32>
    %265 = tpu.reciprocal %264 {approx = true} : vector<2x1x1xf32> -> vector<2x1x1xf32>
    %266 = vector.broadcast %265 : vector<2x1x1xf32> to vector<2x1x128xf32>
    %267 = arith.mulf %262, %266 : vector<2x1x128xf32>
    %268 = vector.broadcast %267 : vector<2x1x128xf32> to vector<2x16x128xf32>
    %269 = arith.mulf %268, %238 : vector<2x16x128xf32>
    %cst_34 = arith.constant dense<0.000000e+00> : vector<2x16xf32>
    %270 = vector.multi_reduction <add>, %269, %cst_34 [2] : vector<2x16x128xf32> to vector<2x16xf32>
    %271 = arith.mulf %270, %270 : vector<2x16xf32>
    %cst_35 = arith.constant dense<0.000000e+00> : vector<2xf32>
    %272 = vector.multi_reduction <add>, %271, %cst_35 [1] : vector<2x16xf32> to vector<2xf32>
    %273 = vector.shape_cast %272 : vector<2xf32> to vector<2x1xf32>
    %274 = math.sqrt %273 : vector<2x1xf32>
    %275 = vector.broadcast %274 : vector<2x1xf32> to vector<2x16xf32>
    %276 = arith.mulf %270, %275 : vector<2x16xf32>
    %cst_36 = arith.constant 1.000000e+00 : f32
    %277 = vector.broadcast %cst_36 : f32 to vector<2x1xf32>
    %278 = arith.addf %277, %273 : vector<2x1xf32>
    %279 = tpu.reciprocal %278 {approx = true} : vector<2x1xf32> -> vector<2x1xf32>
    %280 = vector.broadcast %279 : vector<2x1xf32> to vector<2x16xf32>
    %281 = arith.mulf %276, %280 : vector<2x16xf32>
    %282 = vector.shape_cast %281 : vector<2x16xf32> to vector<2x16x1xf32>
    %283 = vector.broadcast %282 : vector<2x16x1xf32> to vector<2x16x128xf32>
    %284 = arith.mulf %238, %283 : vector<2x16x128xf32>
    %cst_37 = arith.constant dense<0.000000e+00> : vector<2x128xf32>
    %285 = vector.multi_reduction <add>, %284, %cst_37 [1] : vector<2x16x128xf32> to vector<2x128xf32>
    %286 = vector.shape_cast %285 : vector<2x128xf32> to vector<2x1x128xf32>
    %287 = arith.addf %257, %286 : vector<2x1x128xf32>
    %cst_38 = arith.constant dense<0xFF800000> : vector<2x1xf32>
    %288 = vector.multi_reduction <maximumf>, %287, %cst_38 [2] : vector<2x1x128xf32> to vector<2x1xf32>
    %289 = vector.shape_cast %288 : vector<2x1xf32> to vector<2x1x1xf32>
    %290 = vector.broadcast %289 : vector<2x1x1xf32> to vector<2x1x128xf32>
    %291 = arith.subf %287, %290 : vector<2x1x128xf32>
    %292 = math.exp %291 : vector<2x1x128xf32>
    %cst_39 = arith.constant dense<0.000000e+00> : vector<2x1xf32>
    %293 = vector.multi_reduction <add>, %292, %cst_39 [2] : vector<2x1x128xf32> to vector<2x1xf32>
    %294 = vector.shape_cast %293 : vector<2x1xf32> to vector<2x1x1xf32>
    %295 = tpu.reciprocal %294 {approx = true} : vector<2x1x1xf32> -> vector<2x1x1xf32>
    %296 = vector.broadcast %295 : vector<2x1x1xf32> to vector<2x1x128xf32>
    %297 = arith.mulf %292, %296 : vector<2x1x128xf32>
    %298 = vector.broadcast %297 : vector<2x1x128xf32> to vector<2x16x128xf32>
    %299 = arith.mulf %298, %238 : vector<2x16x128xf32>
    %cst_40 = arith.constant dense<0.000000e+00> : vector<2x16xf32>
    %300 = vector.multi_reduction <add>, %299, %cst_40 [2] : vector<2x16x128xf32> to vector<2x16xf32>
    %301 = arith.mulf %300, %300 : vector<2x16xf32>
    %cst_41 = arith.constant dense<0.000000e+00> : vector<2xf32>
    %302 = vector.multi_reduction <add>, %301, %cst_41 [1] : vector<2x16xf32> to vector<2xf32>
    %303 = vector.shape_cast %302 : vector<2xf32> to vector<2x1xf32>
    %304 = math.sqrt %303 : vector<2x1xf32>
    %305 = vector.broadcast %304 : vector<2x1xf32> to vector<2x16xf32>
    %306 = arith.mulf %300, %305 : vector<2x16xf32>
    %cst_42 = arith.constant 1.000000e+00 : f32
    %307 = vector.broadcast %cst_42 : f32 to vector<2x1xf32>
    %308 = arith.addf %307, %303 : vector<2x1xf32>
    %309 = tpu.reciprocal %308 {approx = true} : vector<2x1xf32> -> vector<2x1xf32>
    %310 = vector.broadcast %309 : vector<2x1xf32> to vector<2x16xf32>
    %311 = arith.mulf %306, %310 : vector<2x16xf32>
    %c1_43 = arith.constant 1 : index
    %c0_44 = arith.constant 0 : index
    %c0_45 = arith.constant 0 : index
    %312 = vector.load %arg3[%c1_43, %c0_44, %c0_45] : memref<2x2x16xf32, #tpu.memory_space<vmem>>, vector<1x2x16xf32>
    %313 = vector.shape_cast %312 : vector<1x2x16xf32> to vector<2x16xf32>
    %314 = vector.shape_cast %311 : vector<2x16xf32> to vector<1x2x16xf32>
    tpu.vector_store %arg3[%c1_43, %c0_44, %c0_45], %314 {strides = array<i32>} : memref<2x2x16xf32, #tpu.memory_space<vmem>>, vector<1x2x16xf32>,
    return
  }
  func.func @transform_0(%arg0: i32) -> (i32, i32, i32) {
    %c0_i32 = arith.constant 0 : i32
    %c0_i32_0 = arith.constant 0 : i32
    %c0_i32_1 = arith.constant 0 : i32
    %c0_i32_2 = arith.constant 0 : i32
    return %c0_i32, %c0_i32_0, %c0_i32_1 : i32, i32, i32
  }
  func.func @transform_1(%arg0: i32) -> (i32, i32, i32, i32) {
    %c0_i32 = arith.constant 0 : i32
    %c0_i32_0 = arith.constant 0 : i32
    %c0_i32_1 = arith.constant 0 : i32
    %c0_i32_2 = arith.constant 0 : i32
    return %arg0, %c0_i32, %c0_i32_0, %c0_i32_1 : i32, i32, i32, i32
  }
  func.func @transform_2(%arg0: i32) -> (i32, i32, i32) {
    %c0_i32 = arith.constant 0 : i32
    %c0_i32_0 = arith.constant 0 : i32
    %c0_i32_1 = arith.constant 0 : i32
    return %arg0, %c0_i32, %c0_i32_0 : i32, i32, i32
  }
}

</mosaic_0001>

<llo_original>
// kernel: capsule_layer.1
$region0: #{capsule_layer.1}
  #allocation0 [shape = 'u32[]', space=smem, size = 0x4, offset = 0x4, fixed_abs, tag = 'smem constant byte address 0x4 - core index']
  #allocation1 [shape = 'u32[144,128]{1,0:T(1,128)}', space=vmem, size = 0x12000, scoped, tag = 'internal scratch']
  %s0 = inlined_call_operand.hbm [shape: f32[2,8,128], index: 0, kind: input, shape index: {}]
  %s1 = inlined_call_operand.hbm [shape: f32[4,16,8,128], index: 1, kind: input, shape index: {}]
  %s2 = inlined_call_operand.hbm [shape: f32[4,2,16], index: 2, kind: output, shape index: {}]
  %s3 = sld [smem:[#allocation0]]
  $region49: #{capsule_layer.1} parent=0
    _
  %s5 = ssub.s32 1, %s3
  %s6 = scalar_select 0, %s5, %s3
  $region1: #{capsule_layer.1} parent=0
    #allocation2 [shape = 'u8[8192]{0}', space=vmem, size = 0x2000, scoped, tag = 'input window, operand 0, single buffered']
    #allocation3 [shape = 's32[2]{0}', space=sflag, size = 0x8, scoped, tag = 'scoped memory for capsule_layer.1']
    #allocation4 [shape = 's32[2]{0}', space=sflag, size = 0x8, scoped, tag = 'scoped memory for capsule_layer.1']
    #allocation5 [shape = 'u8[262144]{0}', space=vmem, size = 0x40000, scoped, tag = 'input window, operand 1']
    #allocation6 [shape = 's32[2]{0}', space=sflag, size = 0x8, scoped, tag = 'scoped memory for capsule_layer.1']
    #allocation7 [shape = 'u8[4096]{0}', space=vmem, size = 0x1000, scoped, tag = 'output window, operand 0']
    %7 = vsyncpa [#allocation3], 0
    %8 = vsyncpa [#allocation6], 0
    %s9 = scalar_lea.sflag [#allocation6], 1
    %10 = vsyncpa %s9, 0
    %11 = vsyncpa [#allocation4], 0
    %s12 = scalar_lea.sflag [#allocation4], 1
    %13 = vsyncpa %s12, 0
    loop: start=0, step=1, limit=4
    $region2: #{capsule_layer.1} parent=1 // loop_pre_header
      _
    $region3: #{capsule_layer.1} parent=1 // loop_header
      %s15 = sphi 0, %s19
      %p16 = scmp.ge.s32.totalorder %s15, 4
      %s23 = sphi 0, %s23
      %s25 = sphi 0, %s23
      %s26 = sphi 0, %s25
      %s40 = sphi 0, %s26
      %s46 = sphi 0, %s48
      %s49 = sphi 0, %s46
      %s50 = sphi 0, %s49
      %s66 = sphi 0, %s50
      %s72 = sphi 0, %s74
      %s75 = sphi 0, %s72
      %s76 = sphi 0, %s75
      %s92 = sphi 0, %s76
    $region4: #{capsule_layer.1} parent=1 // loop_header_branch
      %18 = sbr.rel (%p16) target = $region8
    $region5: #{capsule_layer.1} parent=1 // loop_body
      %s20 = ssub.s32 %s15, 1
      %s21 = ssub.s32 %s15, 2
      %s22 = sadd.s32 %s15, 1
      %s24 = sadd.s32 %s23, 1
      %p27 = scmp.eq.s32.totalorder %s15, 1
      %p28 = scmp.ne.s32.totalorder %s23, %s25
      %p29 = scmp.eq.s32.totalorder %s15, 0
      %p30 = por %p28, %p29
      %p31 = scmp.ne.s32.totalorder %s23, %s25
      %p32 = scmp.eq.s32.totalorder %s20, 1
      %p33 = por %p31, %p32
      %p34 = scmp.ne.s32.totalorder %s25, %s26
      %p35 = scmp.eq.s32.totalorder %s20, 0
      %p36 = por %p34, %p35
      %p37 = scmp.ne.s32.totalorder %s25, %s26
      %p38 = scmp.eq.s32.totalorder %s21, 1
      %p39 = por %p37, %p38
      %p41 = scmp.ne.s32.totalorder %s26, %s40
      %p42 = scmp.eq.s32.totalorder %s21, 0
      %p43 = por %p41, %p42
      %s44 = ssub.s32 %s15, %s22
      %p45 = scmp.eq.s32.totalorder %s44, 0
      %s47 = sadd.s32 %s46, 1
      %s48 = scalar_select %p45, %s46, %s47
      %p51 = pneg %p45
      %p52 = scmp.eq.s32.totalorder %s15, 1
      %p53 = por %p51, %p52
      %p54 = scmp.ne.s32.totalorder %s46, %s49
      %p55 = scmp.eq.s32.totalorder %s15, 0
      %p56 = por %p54, %p55
      %p57 = scmp.ne.s32.totalorder %s46, %s49
      %p58 = scmp.eq.s32.totalorder %s20, 1
      %p59 = por %p57, %p58
      %p60 = scmp.ne.s32.totalorder %s49, %s50
      %p61 = scmp.eq.s32.totalorder %s20, 0
      %p62 = por %p60, %p61
      %p63 = scmp.ne.s32.totalorder %s49, %s50
      %p64 = scmp.eq.s32.totalorder %s21, 1
      %p65 = por %p63, %p64
      %p67 = scmp.ne.s32.totalorder %s50, %s66
      %p68 = scmp.eq.s32.totalorder %s21, 0
      %p69 = por %p67, %p68
      %s70 = ssub.s32 %s15, %s22
      %p71 = scmp.eq.s32.totalorder %s70, 0
      %s73 = sadd.s32 %s72, 1
      %s74 = scalar_select %p71, %s72, %s73
      %p77 = pneg %p71
      %p78 = scmp.eq.s32.totalorder %s15, 1
      %p79 = por %p77, %p78
      %p80 = scmp.ne.s32.totalorder %s72, %s75
      %p81 = scmp.eq.s32.totalorder %s15, 0
      %p82 = por %p80, %p81
      %p83 = scmp.ne.s32.totalorder %s72, %s75
      %p84 = scmp.eq.s32.totalorder %s20, 1
      %p85 = por %p83, %p84
      %p86 = scmp.ne.s32.totalorder %s75, %s76
      %p87 = scmp.eq.s32.totalorder %s20, 0
      %p88 = por %p86, %p87
      %p89 = scmp.ne.s32.totalorder %s75, %s76
      %p90 = scmp.eq.s32.totalorder %s21, 1
      %p91 = por %p89, %p90
      %p93 = scmp.ne.s32.totalorder %s76, %s92
      %p94 = scmp.eq.s32.totalorder %s21, 0
      %p95 = por %p93, %p94
      %p96 = scmp.le.s32.totalorder 1, %s15
      %p97 = scmp.lt.s32.totalorder %s15, 3
      %p98 = pnand %p96, %p97
      %p99 = pneg %p98
      // Predicated region
      $region9: #{capsule_layer.1} parent=5 // pred_check
        _
      $region10: #{capsule_layer.1} parent=5 // pred_check_branch
        %101 = sbr.rel (%p98) target = $region12
      $region11: #{capsule_layer.1} parent=5 // pred_region
        %s102 = ssub.s32 %s15, 1
        // Predicated region
        $region13: #{capsule_layer.1} parent=11 // pred_check
          %p103 = pneg %p36
        $region14: #{capsule_layer.1} parent=11 // pred_check_branch
          %105 = sbr.rel (%p103) target = $region16
        $region15: #{capsule_layer.1} parent=11 // pred_region
          %s107 = ssub.s32 256, 256
          %108 = vsyncadd [#allocation3], %s107
          %s109 = sshll.u32 [#allocation2], 4
          %s110 = int_to_ptr.vmem [resolvable:$true] %s109
          %115 = dma.hbm_to_vmem [thread:$0]  %s0, 256, %s110, [#allocation3], 128, 128, 8
        $region16: #{capsule_layer.1} parent=11 // pred_fallthru
          _
      $region12: #{capsule_layer.1} parent=5 // pred_fallthru
        _
      %p116 = scmp.lt.s32.totalorder %s15, 2
      // Predicated region
      $region17: #{capsule_layer.1} parent=5 // pred_check
        %p117 = pneg %p116
      $region18: #{capsule_layer.1} parent=5 // pred_check_branch
        %119 = sbr.rel (%p117) target = $region20
      $region19: #{capsule_layer.1} parent=5 // pred_region
        // Predicated region
        $region21: #{capsule_layer.1} parent=19 // pred_check
          %p120 = pneg %p56
        $region22: #{capsule_layer.1} parent=19 // pred_check_branch
          %122 = sbr.rel (%p120) target = $region24
        $region23: #{capsule_layer.1} parent=19 // pred_region
          %s123 = sand.u32 %s46, 1
          %s124 = scalar_lea.sflag [#allocation6], %s123
          %s125 = sand.u32 %s46, 1
          %s126 = smul.addr %s125, 256
          %s127 = scalar_lea.vmem [#allocation5], %s126
          %s128 = smul.u32 2, %s15
          %s130 = ssub.s32 4096, 4096
          %131 = vsyncadd %s124, %s130
          %s132 = smul.addr %s128, 16
          %s133 = smul.addr %s132, 128
          %s134 = scalar_lea.hbm %s1, %s133
          %s135 = sshll.u32 %s127, 4
          %s136 = int_to_ptr.vmem [resolvable:$true] %s135
          %141 = dma.hbm_to_vmem [thread:$0]  %s134, 4096, %s136, %s124, 128, 128, 8
        $region24: #{capsule_layer.1} parent=19 // pred_fallthru
          _
      $region20: #{capsule_layer.1} parent=5 // pred_fallthru
        _
      %p142 = scmp.le.s32.totalorder 1, %s15
      %p143 = scmp.lt.s32.totalorder %s15, 3
      %p144 = pnand %p142, %p143
      %p145 = pneg %p144
      // Predicated region
      $region25: #{capsule_layer.1} parent=5 // pred_check
        _
      $region26: #{capsule_layer.1} parent=5 // pred_check_branch
        %147 = sbr.rel (%p144) target = $region28
      $region27: #{capsule_layer.1} parent=5 // pred_region
        %s148 = ssub.s32 %s15, 1
        // Predicated region
        $region29: #{capsule_layer.1} parent=27 // pred_check
          %p149 = pneg %p36
        $region30: #{capsule_layer.1} parent=27 // pred_check_branch
          %151 = sbr.rel (%p149) target = $region32
        $region31: #{capsule_layer.1} parent=27 // pred_region
          %152 = dma.done [#allocation3], 256
        $region32: #{capsule_layer.1} parent=27 // pred_fallthru
          _
        %s153 = sand.u32 %s49, 1
        %s154 = scalar_lea.sflag [#allocation6], %s153
        %s155 = sand.u32 %s49, 1
        %s156 = smul.addr %s155, 256
        %s157 = scalar_lea.vmem [#allocation5], %s156
        // Predicated region
        $region33: #{capsule_layer.1} parent=27 // pred_check
          %p158 = pneg %p62
        $region34: #{capsule_layer.1} parent=27 // pred_check_branch
          %160 = sbr.rel (%p158) target = $region36
        $region35: #{capsule_layer.1} parent=27 // pred_region
          %161 = dma.done %s154, 4096
        $region36: #{capsule_layer.1} parent=27 // pred_fallthru
          _
        %p162 = pneg %p36
        %p163 = pneg %p33
        %s164 = sand.u32 %s49, 1
        %s165 = scalar_lea.sflag [#allocation6], %s164
        %s166 = sand.u32 %s49, 1
        %s167 = smul.addr %s166, 256
        %s168 = scalar_lea.vmem [#allocation5], %s167
        %p169 = pneg %p62
        %p170 = pneg %p59
        %p171 = pneg %p88
        %p172 = pneg %p85
        %s173 = sand.u32 %s75, 1
        %s174 = scalar_lea.sflag [#allocation4], %s173
        %s175 = sand.u32 %s75, 1
        %s176 = smul.addr %s175, 4
        %s177 = scalar_lea.vmem [#allocation7], %s176
        %s178 = smul.u32 2, %s20
        %s179 = smul.u32 2, %s20
        %v180 = vld [vmem:[#allocation2] sm:$0xff]
        %v181 = vld [vmem:[#allocation2 + $0x8] sm:$0xff]
        %v182 = vld [vmem:[%s157] sm:$0xff]
        %v183 = vld [vmem:[%s157 + $0x8] sm:$0xff]
        %v184 = vld [vmem:[%s157 + $0x10] sm:$0xff]
        %v185 = vld [vmem:[%s157 + $0x18] sm:$0xff]
        %v186 = vld [vmem:[%s157 + $0x20] sm:$0xff]
        %v187 = vld [vmem:[%s157 + $0x28] sm:$0xff]
        %v188 = vld [vmem:[%s157 + $0x30] sm:$0xff]
        %v189 = vld [vmem:[%s157 + $0x38] sm:$0xff]
        %v190 = vld [vmem:[%s157 + $0x40] sm:$0xff]
        %v191 = vld [vmem:[%s157 + $0x48] sm:$0xff]
        %v192 = vld [vmem:[%s157 + $0x50] sm:$0xff]
        %v193 = vld [vmem:[%s157 + $0x58] sm:$0xff]
        %v194 = vld [vmem:[%s157 + $0x60] sm:$0xff]
        %v195 = vld [vmem:[%s157 + $0x68] sm:$0xff]
        %v196 = vld [vmem:[%s157 + $0x70] sm:$0xff]
        %v197 = vld [vmem:[%s157 + $0x78] sm:$0xff]
        %v198 = vlaneseq
        %v199 = vshrl.u32 %v198, 7
        %v200 = vsub.s32 0, %v199
        %v201 = vrot.slane %v180, %v200
        %v202 = vlaneseq
        %v203 = vshrl.u32 %v202, 7
        %v204 = vsub.s32 0, %v203
        %v205 = vrot.slane %v181, %v204
        %v222 = vrot.slane %v183, 7
        %vm223 = vcmask 1041409
        %v224 = vsel %vm223, %v222, %v182
        %v225 = vrot.slane %v184, 6
        %vm226 = vcmask 1042434
        %v227 = vsel %vm226, %v225, %v224
        %v228 = vrot.slane %v185, 5
        %vm229 = vcmask 1043459
        %v230 = vsel %vm229, %v228, %v227
        %v231 = vrot.slane %v186, 4
        %vm232 = vcmask 1044484
        %v233 = vsel %vm232, %v231, %v230
        %v234 = vrot.slane %v187, 3
        %vm235 = vcmask 1045509
        %v236 = vsel %vm235, %v234, %v233
        %v237 = vrot.slane %v188, 2
        %vm238 = vcmask 1046534
        %v239 = vsel %vm238, %v237, %v236
        %v240 = vrot.slane %v189, 1
        %vm241 = vcmask 1047559
        %v242 = vsel %vm241, %v240, %v239
        %v243 = vrot.slane %v191, 7
        %v244 = vsel %vm223, %v243, %v190
        %v245 = vrot.slane %v192, 6
        %v246 = vsel %vm226, %v245, %v244
        %v247 = vrot.slane %v193, 5
        %v248 = vsel %vm229, %v247, %v246
        %v249 = vrot.slane %v194, 4
        %v250 = vsel %vm232, %v249, %v248
        %v251 = vrot.slane %v195, 3
        %v252 = vsel %vm235, %v251, %v250
        %v253 = vrot.slane %v196, 2
        %v254 = vsel %vm238, %v253, %v252
        %v255 = vrot.slane %v197, 1
        %v256 = vsel %vm241, %v255, %v254
        %v259 = vmul.f32 %v201, %v242
        %v260 = vmul.f32 %v201, %v256
        %v261 = vmul.f32 %v205, %v242
        %v262 = vmul.f32 %v205, %v256
        %v263 = vlaneseq
        %v264 = vshrl.u32 %v263, 7
        %v265 = vsub.s32 1, %v264
        %v266 = vrot.slane %v180, %v265
        %v267 = vlaneseq
        %v268 = vshrl.u32 %v267, 7
        %v269 = vsub.s32 1, %v268
        %v270 = vrot.slane %v181, %v269
        %v271 = vrot.slane %v182, 1
        %v272 = vsel %vm223, %v183, %v271
        %v273 = vrot.slane %v184, 7
        %v274 = vsel %vm226, %v273, %v272
        %v275 = vrot.slane %v185, 6
        %v276 = vsel %vm229, %v275, %v274
        %v277 = vrot.slane %v186, 5
        %v278 = vsel %vm232, %v277, %v276
        %v279 = vrot.slane %v187, 4
        %v280 = vsel %vm235, %v279, %v278
        %v281 = vrot.slane %v188, 3
        %v282 = vsel %vm238, %v281, %v280
        %v283 = vrot.slane %v189, 2
        %v284 = vsel %vm241, %v283, %v282
        %v285 = vrot.slane %v190, 1
        %v286 = vsel %vm223, %v191, %v285
        %v287 = vrot.slane %v192, 7
        %v288 = vsel %vm226, %v287, %v286
        %v289 = vrot.slane %v193, 6
        %v290 = vsel %vm229, %v289, %v288
        %v291 = vrot.slane %v194, 5
        %v292 = vsel %vm232, %v291, %v290
        %v293 = vrot.slane %v195, 4
        %v294 = vsel %vm235, %v293, %v292
        %v295 = vrot.slane %v196, 3
        %v296 = vsel %vm238, %v295, %v294
        %v297 = vrot.slane %v197, 2
        %v298 = vsel %vm241, %v297, %v296
        %v301 = vmul.f32 %v266, %v284
        %v302 = vmul.f32 %v266, %v298
        %v303 = vmul.f32 %v270, %v284
        %v304 = vmul.f32 %v270, %v298
        %v305 = vadd.f32 %v259, %v301
        %v306 = vadd.f32 %v260, %v302
        %v307 = vadd.f32 %v261, %v303
        %v308 = vadd.f32 %v262, %v304
        %v309 = vlaneseq
        %v310 = vshrl.u32 %v309, 7
        %v311 = vsub.s32 2, %v310
        %v312 = vrot.slane %v180, %v311
        %v313 = vlaneseq
        %v314 = vshrl.u32 %v313, 7
        %v315 = vsub.s32 2, %v314
        %v316 = vrot.slane %v181, %v315
        %v317 = vrot.slane %v182, 2
        %v318 = vrot.slane %v183, 1
        %v319 = vsel %vm223, %v318, %v317
        %v320 = vsel %vm226, %v184, %v319
        %v321 = vrot.slane %v185, 7
        %v322 = vsel %vm229, %v321, %v320
        %v323 = vrot.slane %v186, 6
        %v324 = vsel %vm232, %v323, %v322
        %v325 = vrot.slane %v187, 5
        %v326 = vsel %vm235, %v325, %v324
        %v327 = vrot.slane %v188, 4
        %v328 = vsel %vm238, %v327, %v326
        %v329 = vrot.slane %v189, 3
        %v330 = vsel %vm241, %v329, %v328
        %v331 = vrot.slane %v190, 2
        %v332 = vrot.slane %v191, 1
        %v333 = vsel %vm223, %v332, %v331
        %v334 = vsel %vm226, %v192, %v333
        %v335 = vrot.slane %v193, 7
        %v336 = vsel %vm229, %v335, %v334
        %v337 = vrot.slane %v194, 6
        %v338 = vsel %vm232, %v337, %v336
        %v339 = vrot.slane %v195, 5
        %v340 = vsel %vm235, %v339, %v338
        %v341 = vrot.slane %v196, 4
        %v342 = vsel %vm238, %v341, %v340
        %v343 = vrot.slane %v197, 3
        %v344 = vsel %vm241, %v343, %v342
        %v347 = vmul.f32 %v312, %v330
        %v348 = vmul.f32 %v312, %v344
        %v349 = vmul.f32 %v316, %v330
        %v350 = vmul.f32 %v316, %v344
        %v351 = vadd.f32 %v305, %v347
        %v352 = vadd.f32 %v306, %v348
        %v353 = vadd.f32 %v307, %v349
        %v354 = vadd.f32 %v308, %v350
        %v355 = vlaneseq
        %v356 = vshrl.u32 %v355, 7
        %v357 = vsub.s32 3, %v356
        %v358 = vrot.slane %v180, %v357
        %v359 = vlaneseq
        %v360 = vshrl.u32 %v359, 7
        %v361 = vsub.s32 3, %v360
        %v362 = vrot.slane %v181, %v361
        %v363 = vrot.slane %v182, 3
        %v364 = vrot.slane %v183, 2
        %v365 = vsel %vm223, %v364, %v363
        %v366 = vrot.slane %v184, 1
        %v367 = vsel %vm226, %v366, %v365
        %v368 = vsel %vm229, %v185, %v367
        %v369 = vrot.slane %v186, 7
        %v370 = vsel %vm232, %v369, %v368
        %v371 = vrot.slane %v187, 6
        %v372 = vsel %vm235, %v371, %v370
        %v373 = vrot.slane %v188, 5
        %v374 = vsel %vm238, %v373, %v372
        %v375 = vrot.slane %v189, 4
        %v376 = vsel %vm241, %v375, %v374
        %v377 = vrot.slane %v190, 3
        %v378 = vrot.slane %v191, 2
        %v379 = vsel %vm223, %v378, %v377
        %v380 = vrot.slane %v192, 1
        %v381 = vsel %vm226, %v380, %v379
        %v382 = vsel %vm229, %v193, %v381
        %v383 = vrot.slane %v194, 7
        %v384 = vsel %vm232, %v383, %v382
        %v385 = vrot.slane %v195, 6
        %v386 = vsel %vm235, %v385, %v384
        %v387 = vrot.slane %v196, 5
        %v388 = vsel %vm238, %v387, %v386
        %v389 = vrot.slane %v197, 4
        %v390 = vsel %vm241, %v389, %v388
        %v393 = vmul.f32 %v358, %v376
        %v394 = vmul.f32 %v358, %v390
        %v395 = vmul.f32 %v362, %v376
        %v396 = vmul.f32 %v362, %v390
        %v397 = vadd.f32 %v351, %v393
        %v398 = vadd.f32 %v352, %v394
        %v399 = vadd.f32 %v353, %v395
        %v400 = vadd.f32 %v354, %v396
        %v401 = vlaneseq
        %v402 = vshrl.u32 %v401, 7
        %v403 = vsub.s32 4, %v402
        %v404 = vrot.slane %v180, %v403
        %v405 = vlaneseq
        %v406 = vshrl.u32 %v405, 7
        %v407 = vsub.s32 4, %v406
        %v408 = vrot.slane %v181, %v407
        %v409 = vrot.slane %v182, 4
        %v410 = vrot.slane %v183, 3
        %v411 = vsel %vm223, %v410, %v409
        %v412 = vrot.slane %v184, 2
        %v413 = vsel %vm226, %v412, %v411
        %v414 = vrot.slane %v185, 1
        %v415 = vsel %vm229, %v414, %v413
        %v416 = vsel %vm232, %v186, %v415
        %v417 = vrot.slane %v187, 7
        %v418 = vsel %vm235, %v417, %v416
        %v419 = vrot.slane %v188, 6
        %v420 = vsel %vm238, %v419, %v418
        %v421 = vrot.slane %v189, 5
        %v422 = vsel %vm241, %v421, %v420
        %v423 = vrot.slane %v190, 4
        %v424 = vrot.slane %v191, 3
        %v425 = vsel %vm223, %v424, %v423
        %v426 = vrot.slane %v192, 2
        %v427 = vsel %vm226, %v426, %v425
        %v428 = vrot.slane %v193, 1
        %v429 = vsel %vm229, %v428, %v427
        %v430 = vsel %vm232, %v194, %v429
        %v431 = vrot.slane %v195, 7
        %v432 = vsel %vm235, %v431, %v430
        %v433 = vrot.slane %v196, 6
        %v434 = vsel %vm238, %v433, %v432
        %v435 = vrot.slane %v197, 5
        %v436 = vsel %vm241, %v435, %v434
        %v439 = vmul.f32 %v404, %v422
        %v440 = vmul.f32 %v404, %v436
        %v441 = vmul.f32 %v408, %v422
        %v442 = vmul.f32 %v408, %v436
        %v443 = vadd.f32 %v397, %v439
        %v444 = vadd.f32 %v398, %v440
        %v445 = vadd.f32 %v399, %v441
        %v446 = vadd.f32 %v400, %v442
        %v447 = vlaneseq
        %v448 = vshrl.u32 %v447, 7
        %v449 = vsub.s32 5, %v448
        %v450 = vrot.slane %v180, %v449
        %v451 = vlaneseq
        %v452 = vshrl.u32 %v451, 7
        %v453 = vsub.s32 5, %v452
        %v454 = vrot.slane %v181, %v453
        %v455 = vrot.slane %v182, 5
        %v456 = vrot.slane %v183, 4
        %v457 = vsel %vm223, %v456, %v455
        %v458 = vrot.slane %v184, 3
        %v459 = vsel %vm226, %v458, %v457
        %v460 = vrot.slane %v185, 2
        %v461 = vsel %vm229, %v460, %v459
        %v462 = vrot.slane %v186, 1
        %v463 = vsel %vm232, %v462, %v461
        %v464 = vsel %vm235, %v187, %v463
        %v465 = vrot.slane %v188, 7
        %v466 = vsel %vm238, %v465, %v464
        %v467 = vrot.slane %v189, 6
        %v468 = vsel %vm241, %v467, %v466
        %v469 = vrot.slane %v190, 5
        %v470 = vrot.slane %v191, 4
        %v471 = vsel %vm223, %v470, %v469
        %v472 = vrot.slane %v192, 3
        %v473 = vsel %vm226, %v472, %v471
        %v474 = vrot.slane %v193, 2
        %v475 = vsel %vm229, %v474, %v473
        %v476 = vrot.slane %v194, 1
        %v477 = vsel %vm232, %v476, %v475
        %v478 = vsel %vm235, %v195, %v477
        %v479 = vrot.slane %v196, 7
        %v480 = vsel %vm238, %v479, %v478
        %v481 = vrot.slane %v197, 6
        %v482 = vsel %vm241, %v481, %v480
        %v485 = vmul.f32 %v450, %v468
        %v486 = vmul.f32 %v450, %v482
        %v487 = vmul.f32 %v454, %v468
        %v488 = vmul.f32 %v454, %v482
        %v489 = vadd.f32 %v443, %v485
        %v490 = vadd.f32 %v444, %v486
        %v491 = vadd.f32 %v445, %v487
        %v492 = vadd.f32 %v446, %v488
        %v493 = vlaneseq
        %v494 = vshrl.u32 %v493, 7
        %v495 = vsub.s32 6, %v494
        %v496 = vrot.slane %v180, %v495
        %v497 = vlaneseq
        %v498 = vshrl.u32 %v497, 7
        %v499 = vsub.s32 6, %v498
        %v500 = vrot.slane %v181, %v499
        %v501 = vrot.slane %v182, 6
        %v502 = vrot.slane %v183, 5
        %v503 = vsel %vm223, %v502, %v501
        %v504 = vrot.slane %v184, 4
        %v505 = vsel %vm226, %v504, %v503
        %v506 = vrot.slane %v185, 3
        %v507 = vsel %vm229, %v506, %v505
        %v508 = vrot.slane %v186, 2
        %v509 = vsel %vm232, %v508, %v507
        %v510 = vrot.slane %v187, 1
        %v511 = vsel %vm235, %v510, %v509
        %v512 = vsel %vm238, %v188, %v511
        %v513 = vrot.slane %v189, 7
        %v514 = vsel %vm241, %v513, %v512
        %v515 = vrot.slane %v190, 6
        %v516 = vrot.slane %v191, 5
        %v517 = vsel %vm223, %v516, %v515
        %v518 = vrot.slane %v192, 4
        %v519 = vsel %vm226, %v518, %v517
        %v520 = vrot.slane %v193, 3
        %v521 = vsel %vm229, %v520, %v519
        %v522 = vrot.slane %v194, 2
        %v523 = vsel %vm232, %v522, %v521
        %v524 = vrot.slane %v195, 1
        %v525 = vsel %vm235, %v524, %v523
        %v526 = vsel %vm238, %v196, %v525
        %v527 = vrot.slane %v197, 7
        %v528 = vsel %vm241, %v527, %v526
        %v531 = vmul.f32 %v496, %v514
        %v532 = vmul.f32 %v496, %v528
        %v533 = vmul.f32 %v500, %v514
        %v534 = vmul.f32 %v500, %v528
        %v535 = vadd.f32 %v489, %v531
        %v536 = vadd.f32 %v490, %v532
        %v537 = vadd.f32 %v491, %v533
        %v538 = vadd.f32 %v492, %v534
        %v539 = vlaneseq
        %v540 = vshrl.u32 %v539, 7
        %v541 = vsub.s32 7, %v540
        %v542 = vrot.slane %v180, %v541
        %v543 = vlaneseq
        %v544 = vshrl.u32 %v543, 7
        %v545 = vsub.s32 7, %v544
        %v546 = vrot.slane %v181, %v545
        %v547 = vrot.slane %v182, 7
        %v548 = vrot.slane %v183, 6
        %v549 = vsel %vm223, %v548, %v547
        %v550 = vrot.slane %v184, 5
        %v551 = vsel %vm226, %v550, %v549
        %v552 = vrot.slane %v185, 4
        %v553 = vsel %vm229, %v552, %v551
        %v554 = vrot.slane %v186, 3
        %v555 = vsel %vm232, %v554, %v553
        %v556 = vrot.slane %v187, 2
        %v557 = vsel %vm235, %v556, %v555
        %v558 = vrot.slane %v188, 1
        %v559 = vsel %vm238, %v558, %v557
        %v560 = vsel %vm241, %v189, %v559
        %v561 = vrot.slane %v190, 7
        %v562 = vrot.slane %v191, 6
        %v563 = vsel %vm223, %v562, %v561
        %v564 = vrot.slane %v192, 5
        %v565 = vsel %vm226, %v564, %v563
        %v566 = vrot.slane %v193, 4
        %v567 = vsel %vm229, %v566, %v565
        %v568 = vrot.slane %v194, 3
        %v569 = vsel %vm232, %v568, %v567
        %v570 = vrot.slane %v195, 2
        %v571 = vsel %vm235, %v570, %v569
        %v572 = vrot.slane %v196, 1
        %v573 = vsel %vm238, %v572, %v571
        %v574 = vsel %vm241, %v197, %v573
        %v577 = vmul.f32 %v542, %v560
        %v578 = vmul.f32 %v542, %v574
        %v579 = vmul.f32 %v546, %v560
        %v580 = vmul.f32 %v546, %v574
        %v581 = vadd.f32 %v535, %v577
        %v582 = vadd.f32 %v536, %v578
        %v583 = vadd.f32 %v537, %v579
        %v584 = vadd.f32 %v538, %v580
        %585 = vadd.xlane.f32.xlu0 %v581
        %v586 = vpop.xlane.xlu0 %585
        %587 = vadd.xlane.f32.xlu0 %v582
        %v588 = vpop.xlane.xlu0 %587
        %589 = vadd.xlane.f32.xlu0 %v583
        %v590 = vpop.xlane.xlu0 %589
        %591 = vadd.xlane.f32.xlu0 %v584
        %v592 = vpop.xlane.xlu0 %591
        %v593 = vmul.f32 %v586, 0.0078125
        %v594 = vmul.f32 %v588, 0.0078125
        %v595 = vmul.f32 %v590, 0.0078125
        %v596 = vmul.f32 %v592, 0.0078125
        %v597 = vmul.f32 %v593, %v593
        %v598 = vmul.f32 %v594, %v594
        %v599 = vmul.f32 %v595, %v595
        %v600 = vmul.f32 %v596, %v596
        %v605 = vlaneseq
        %v606 = vand.u32 %v605, 127
        %v607 = vlaneseq
        %v608 = vshrl.u32 %v607, 7
        %v609 = vsub.s32 %v606, %v608
        %v610 = vrot.slane %v597, %v609
        %v611 = vadd.s32 %v606, 4294967288
        %v612 = vlaneseq
        %v613 = vshrl.u32 %v612, 7
        %v614 = vsub.s32 %v611, %v613
        %v615 = vrot.slane %v598, %v614
        %vm616 = vcmask 130112
        %v617 = vsel %vm616, %v615, %v610
        %v618 = vlaneseq
        %v619 = vshrl.u32 %v618, 7
        %v620 = vsub.s32 %v606, %v619
        %v621 = vrot.slane %v599, %v620
        %v622 = vlaneseq
        %v623 = vshrl.u32 %v622, 7
        %v624 = vsub.s32 %v611, %v623
        %v625 = vrot.slane %v600, %v624
        %v626 = vsel %vm616, %v625, %v621
        %v627 = vsel %vm223, %v626, %v617
        %vm629 = vcmask 123904
        %v630 = vsel %vm629, %v627, 0.0
        %631 = vadd.xlane.f32.xlu0 %v630
        %v632 = vpop.xlane.xlu0 %631
        %v633 = vrsqrt.pop %v632
        %v634 = vmul.f32 %v632, %v633
        %vm635 = vcmp.eq.f32.partialorder %v632, inf
        %v636 = vsel %vm635, %v632, %v634
        %vm637 = vcmp.eq.f32.partialorder %v632, 0.0
        %v638 = vand.u32 %v632, 2147483648
        %v639 = vsel %vm637, %v638, %v636
        %v641 = vlaneseq
        %v642 = vshrl.u32 %v641, 7
        %v643 = vsub.s32 0, %v642
        %v644 = vrot.slane %v639, %v643
        %v645 = vlaneseq
        %v646 = vshrl.u32 %v645, 7
        %v647 = vsub.s32 1, %v646
        %v648 = vrot.slane %v639, %v647
        %v651 = vmul.f32 %v593, %v644
        %v652 = vmul.f32 %v594, %v644
        %v653 = vmul.f32 %v595, %v648
        %v654 = vmul.f32 %v596, %v648
        %v655 = vadd.f32 %v632, 1.0
        %v656 = vrcp.pop %v655
        %v658 = vlaneseq
        %v659 = vshrl.u32 %v658, 7
        %v660 = vsub.s32 0, %v659
        %v661 = vrot.slane %v656, %v660
        %v662 = vlaneseq
        %v663 = vshrl.u32 %v662, 7
        %v664 = vsub.s32 1, %v663
        %v665 = vrot.slane %v656, %v664
        %v668 = vmul.f32 %v651, %v661
        %v669 = vmul.f32 %v652, %v661
        %v670 = vmul.f32 %v653, %v665
        %v671 = vmul.f32 %v654, %v665
        %673 = vset.pattern.permute.xlu0 0
        %674 = vperm.xlu0 %673, %v668
        %v675 = vpop.permute.xlu0 %674
        %678 = vset.pattern.permute.xlu0 0
        %679 = vperm.xlu0 %678, %v669
        %v680 = vpop.permute.xlu0 %679
        %683 = vset.pattern.permute.xlu0 0
        %684 = vperm.xlu0 %683, %v670
        %v685 = vpop.permute.xlu0 %684
        %688 = vset.pattern.permute.xlu0 0
        %689 = vperm.xlu0 %688, %v671
        %v690 = vpop.permute.xlu0 %689
        %v692 = vmul.f32 %v581, %v675
        %v693 = vmul.f32 %v582, %v680
        %v694 = vmul.f32 %v583, %v685
        %v695 = vmul.f32 %v584, %v690
        %v696 = vadd.f32 %v692, %v693
        %v697 = vrot.slane %v696, 4
        %v698 = vadd.f32 %v696, %v697
        %v699 = vrot.slane %v698, 2
        %v700 = vadd.f32 %v698, %v699
        %v701 = vrot.slane %v700, 1
        %v702 = vadd.f32 %v700, %v701
        %v703 = vadd.f32 %v694, %v695
        %v704 = vrot.slane %v703, 4
        %v705 = vadd.f32 %v703, %v704
        %v706 = vrot.slane %v705, 2
        %v707 = vadd.f32 %v705, %v706
        %v708 = vrot.slane %v707, 1
        %v709 = vadd.f32 %v707, %v708
        %710 = vmax.xlane.f32.xlu0 %v702
        %v711 = vpop.xlane.xlu0 %710
        %712 = vmax.xlane.f32.xlu0 %v709
        %v713 = vpop.xlane.xlu0 %712
        %v714 = vsub.f32 %v702, %v711
        %v715 = vsub.f32 %v709, %v713
        %v716 = vmul.f32 %v714, 1.442695
        %v717 = vpow.pop %v716
        %v718 = vmul.f32 %v715, 1.442695
        %v719 = vpow.pop %v718
        %720 = vadd.xlane.f32.xlu0 %v717
        %v721 = vpop.xlane.xlu0 %720
        %722 = vadd.xlane.f32.xlu0 %v719
        %v723 = vpop.xlane.xlu0 %722
        %v724 = vrcp.pop %v721
        %v725 = vrcp.pop %v723
        %v726 = vmul.f32 %v717, %v724
        %v727 = vmul.f32 %v719, %v725
        %v728 = vmul.f32 %v726, %v581
        %v729 = vmul.f32 %v726, %v582
        %v730 = vmul.f32 %v727, %v583
        %v731 = vmul.f32 %v727, %v584
        %732 = vadd.xlane.f32.xlu0 %v728
        %v733 = vpop.xlane.xlu0 %732
        %734 = vadd.xlane.f32.xlu0 %v729
        %v735 = vpop.xlane.xlu0 %734
        %736 = vadd.xlane.f32.xlu0 %v730
        %v737 = vpop.xlane.xlu0 %736
        %738 = vadd.xlane.f32.xlu0 %v731
        %v739 = vpop.xlane.xlu0 %738
        %v740 = vmul.f32 %v733, %v733
        %v741 = vmul.f32 %v735, %v735
        %v742 = vmul.f32 %v737, %v737
        %v743 = vmul.f32 %v739, %v739
        %v748 = vlaneseq
        %v749 = vshrl.u32 %v748, 7
        %v750 = vsub.s32 %v606, %v749
        %v751 = vrot.slane %v740, %v750
        %v752 = vlaneseq
        %v753 = vshrl.u32 %v752, 7
        %v754 = vsub.s32 %v611, %v753
        %v755 = vrot.slane %v741, %v754
        %v756 = vsel %vm616, %v755, %v751
        %v757 = vlaneseq
        %v758 = vshrl.u32 %v757, 7
        %v759 = vsub.s32 %v606, %v758
        %v760 = vrot.slane %v742, %v759
        %v761 = vlaneseq
        %v762 = vshrl.u32 %v761, 7
        %v763 = vsub.s32 %v611, %v762
        %v764 = vrot.slane %v743, %v763
        %v765 = vsel %vm616, %v764, %v760
        %v766 = vsel %vm223, %v765, %v756
        %v768 = vsel %vm629, %v766, 0.0
        %769 = vadd.xlane.f32.xlu0 %v768
        %v770 = vpop.xlane.xlu0 %769
        %v771 = vrsqrt.pop %v770
        %v772 = vmul.f32 %v770, %v771
        %vm773 = vcmp.eq.f32.partialorder %v770, inf
        %v774 = vsel %vm773, %v770, %v772
        %vm775 = vcmp.eq.f32.partialorder %v770, 0.0
        %v776 = vand.u32 %v770, 2147483648
        %v777 = vsel %vm775, %v776, %v774
        %v779 = vlaneseq
        %v780 = vshrl.u32 %v779, 7
        %v781 = vsub.s32 0, %v780
        %v782 = vrot.slane %v777, %v781
        %v783 = vlaneseq
        %v784 = vshrl.u32 %v783, 7
        %v785 = vsub.s32 1, %v784
        %v786 = vrot.slane %v777, %v785
        %v789 = vmul.f32 %v733, %v782
        %v790 = vmul.f32 %v735, %v782
        %v791 = vmul.f32 %v737, %v786
        %v792 = vmul.f32 %v739, %v786
        %v793 = vadd.f32 %v770, 1.0
        %v794 = vrcp.pop %v793
        %v796 = vlaneseq
        %v797 = vshrl.u32 %v796, 7
        %v798 = vsub.s32 0, %v797
        %v799 = vrot.slane %v794, %v798
        %v800 = vlaneseq
        %v801 = vshrl.u32 %v800, 7
        %v802 = vsub.s32 1, %v801
        %v803 = vrot.slane %v794, %v802
        %v806 = vmul.f32 %v789, %v799
        %v807 = vmul.f32 %v790, %v799
        %v808 = vmul.f32 %v791, %v803
        %v809 = vmul.f32 %v792, %v803
        %811 = vset.pattern.permute.xlu0 0
        %812 = vperm.xlu0 %811, %v806
        %v813 = vpop.permute.xlu0 %812
        %816 = vset.pattern.permute.xlu0 0
        %817 = vperm.xlu0 %816, %v807
        %v818 = vpop.permute.xlu0 %817
        %821 = vset.pattern.permute.xlu0 0
        %822 = vperm.xlu0 %821, %v808
        %v823 = vpop.permute.xlu0 %822
        %826 = vset.pattern.permute.xlu0 0
        %827 = vperm.xlu0 %826, %v809
        %v828 = vpop.permute.xlu0 %827
        %v830 = vmul.f32 %v581, %v813
        %v831 = vmul.f32 %v582, %v818
        %v832 = vmul.f32 %v583, %v823
        %v833 = vmul.f32 %v584, %v828
        %v834 = vadd.f32 %v830, %v831
        %v835 = vrot.slane %v834, 4
        %v836 = vadd.f32 %v834, %v835
        %v837 = vrot.slane %v836, 2
        %v838 = vadd.f32 %v836, %v837
        %v839 = vrot.slane %v838, 1
        %v840 = vadd.f32 %v838, %v839
        %v841 = vadd.f32 %v832, %v833
        %v842 = vrot.slane %v841, 4
        %v843 = vadd.f32 %v841, %v842
        %v844 = vrot.slane %v843, 2
        %v845 = vadd.f32 %v843, %v844
        %v846 = vrot.slane %v845, 1
        %v847 = vadd.f32 %v845, %v846
        %v848 = vadd.f32 %v702, %v840
        %v849 = vadd.f32 %v709, %v847
        %850 = vmax.xlane.f32.xlu0 %v848
        %v851 = vpop.xlane.xlu0 %850
        %852 = vmax.xlane.f32.xlu0 %v849
        %v853 = vpop.xlane.xlu0 %852
        %v854 = vsub.f32 %v848, %v851
        %v855 = vsub.f32 %v849, %v853
        %v856 = vmul.f32 %v854, 1.442695
        %v857 = vpow.pop %v856
        %v858 = vmul.f32 %v855, 1.442695
        %v859 = vpow.pop %v858
        %860 = vadd.xlane.f32.xlu0 %v857
        %v861 = vpop.xlane.xlu0 %860
        %862 = vadd.xlane.f32.xlu0 %v859
        %v863 = vpop.xlane.xlu0 %862
        %v864 = vrcp.pop %v861
        %v865 = vrcp.pop %v863
        %v866 = vmul.f32 %v857, %v864
        %v867 = vmul.f32 %v859, %v865
        %v868 = vmul.f32 %v866, %v581
        %v869 = vmul.f32 %v866, %v582
        %v870 = vmul.f32 %v867, %v583
        %v871 = vmul.f32 %v867, %v584
        %872 = vadd.xlane.f32.xlu0 %v868
        %v873 = vpop.xlane.xlu0 %872
        %874 = vadd.xlane.f32.xlu0 %v869
        %v875 = vpop.xlane.xlu0 %874
        %876 = vadd.xlane.f32.xlu0 %v870
        %v877 = vpop.xlane.xlu0 %876
        %878 = vadd.xlane.f32.xlu0 %v871
        %v879 = vpop.xlane.xlu0 %878
        %v880 = vmul.f32 %v873, %v873
        %v881 = vmul.f32 %v875, %v875
        %v882 = vmul.f32 %v877, %v877
        %v883 = vmul.f32 %v879, %v879
        %v888 = vlaneseq
        %v889 = vshrl.u32 %v888, 7
        %v890 = vsub.s32 %v606, %v889
        %v891 = vrot.slane %v880, %v890
        %v892 = vlaneseq
        %v893 = vshrl.u32 %v892, 7
        %v894 = vsub.s32 %v611, %v893
        %v895 = vrot.slane %v881, %v894
        %v896 = vsel %vm616, %v895, %v891
        %v897 = vlaneseq
        %v898 = vshrl.u32 %v897, 7
        %v899 = vsub.s32 %v606, %v898
        %v900 = vrot.slane %v882, %v899
        %v901 = vlaneseq
        %v902 = vshrl.u32 %v901, 7
        %v903 = vsub.s32 %v611, %v902
        %v904 = vrot.slane %v883, %v903
        %v905 = vsel %vm616, %v904, %v900
        %v906 = vsel %vm223, %v905, %v896
        %v908 = vsel %vm629, %v906, 0.0
        %909 = vadd.xlane.f32.xlu0 %v908
        %v910 = vpop.xlane.xlu0 %909
        %v911 = vrsqrt.pop %v910
        %v912 = vmul.f32 %v910, %v911
        %vm913 = vcmp.eq.f32.partialorder %v910, inf
        %v914 = vsel %vm913, %v910, %v912
        %vm915 = vcmp.eq.f32.partialorder %v910, 0.0
        %v916 = vand.u32 %v910, 2147483648
        %v917 = vsel %vm915, %v916, %v914
        %v919 = vlaneseq
        %v920 = vshrl.u32 %v919, 7
        %v921 = vsub.s32 0, %v920
        %v922 = vrot.slane %v917, %v921
        %v923 = vlaneseq
        %v924 = vshrl.u32 %v923, 7
        %v925 = vsub.s32 1, %v924
        %v926 = vrot.slane %v917, %v925
        %v929 = vmul.f32 %v873, %v922
        %v930 = vmul.f32 %v875, %v922
        %v931 = vmul.f32 %v877, %v926
        %v932 = vmul.f32 %v879, %v926
        %v933 = vadd.f32 %v910, 1.0
        %v934 = vrcp.pop %v933
        %v936 = vlaneseq
        %v937 = vshrl.u32 %v936, 7
        %v938 = vsub.s32 0, %v937
        %v939 = vrot.slane %v934, %v938
        %v940 = vlaneseq
        %v941 = vshrl.u32 %v940, 7
        %v942 = vsub.s32 1, %v941
        %v943 = vrot.slane %v934, %v942
        %v946 = vmul.f32 %v929, %v939
        %v947 = vmul.f32 %v930, %v939
        %v948 = vmul.f32 %v931, %v943
        %v949 = vmul.f32 %v932, %v943
        %954 = vset.pattern.permute.xlu0 0
        %955 = vperm.xlu0 %954, %v946
        %v956 = vpop.permute.xlu0 %955
        %957 = vset.pattern.permute.xlu0 0
        %958 = vperm.xlu0 %957, %v947
        %v959 = vpop.permute.xlu0 %958
        %960 = vset.pattern.permute.xlu0 0
        %961 = vperm.xlu0 %960, %v948
        %v962 = vpop.permute.xlu0 %961
        %963 = vset.pattern.permute.xlu0 0
        %964 = vperm.xlu0 %963, %v949
        %v965 = vpop.permute.xlu0 %964
        %v966 = vlaneseq
        %v967 = vshrl.u32 %v966, 7
        %v968 = vsub.s32 %v606, %v967
        %v969 = vrot.slane %v956, %v968
        %v970 = vlaneseq
        %v971 = vshrl.u32 %v970, 7
        %v972 = vsub.s32 %v611, %v971
        %v973 = vrot.slane %v959, %v972
        %v974 = vsel %vm616, %v973, %v969
        %v975 = vlaneseq
        %v976 = vshrl.u32 %v975, 7
        %v977 = vsub.s32 %v606, %v976
        %v978 = vrot.slane %v962, %v977
        %v979 = vlaneseq
        %v980 = vshrl.u32 %v979, 7
        %v981 = vsub.s32 %v611, %v980
        %v982 = vrot.slane %v965, %v981
        %v983 = vsel %vm616, %v982, %v978
        %v984 = vsel %vm223, %v983, %v974
        %986 = vst.msk [vmem:[%s177] sm:$0x3] %vm629, %v984
        %s987 = scalar_lea.vmem %s157, 128 [#allocation5]
        %v988 = vld [vmem:[%s987] sm:$0xff]
        %v989 = vld [vmem:[%s987 + $0x8] sm:$0xff]
        %v990 = vld [vmem:[%s987 + $0x10] sm:$0xff]
        %v991 = vld [vmem:[%s987 + $0x18] sm:$0xff]
        %v992 = vld [vmem:[%s987 + $0x20] sm:$0xff]
        %v993 = vld [vmem:[%s987 + $0x28] sm:$0xff]
        %v994 = vld [vmem:[%s987 + $0x30] sm:$0xff]
        %v995 = vld [vmem:[%s987 + $0x38] sm:$0xff]
        %v996 = vld [vmem:[%s987 + $0x40] sm:$0xff]
        %v997 = vld [vmem:[%s987 + $0x48] sm:$0xff]
        %v998 = vld [vmem:[%s987 + $0x50] sm:$0xff]
        %v999 = vld [vmem:[%s987 + $0x58] sm:$0xff]
        %v1000 = vld [vmem:[%s987 + $0x60] sm:$0xff]
        %v1001 = vld [vmem:[%s987 + $0x68] sm:$0xff]
        %v1002 = vld [vmem:[%s987 + $0x70] sm:$0xff]
        %v1003 = vld [vmem:[%s987 + $0x78] sm:$0xff]
        %v1020 = vrot.slane %v989, 7
        %v1021 = vsel %vm223, %v1020, %v988
        %v1022 = vrot.slane %v990, 6
        %v1023 = vsel %vm226, %v1022, %v1021
        %v1024 = vrot.slane %v991, 5
        %v1025 = vsel %vm229, %v1024, %v1023
        %v1026 = vrot.slane %v992, 4
        %v1027 = vsel %vm232, %v1026, %v1025
        %v1028 = vrot.slane %v993, 3
        %v1029 = vsel %vm235, %v1028, %v1027
        %v1030 = vrot.slane %v994, 2
        %v1031 = vsel %vm238, %v1030, %v1029
        %v1032 = vrot.slane %v995, 1
        %v1033 = vsel %vm241, %v1032, %v1031
        %v1034 = vrot.slane %v997, 7
        %v1035 = vsel %vm223, %v1034, %v996
        %v1036 = vrot.slane %v998, 6
        %v1037 = vsel %vm226, %v1036, %v1035
        %v1038 = vrot.slane %v999, 5
        %v1039 = vsel %vm229, %v1038, %v1037
        %v1040 = vrot.slane %v1000, 4
        %v1041 = vsel %vm232, %v1040, %v1039
        %v1042 = vrot.slane %v1001, 3
        %v1043 = vsel %vm235, %v1042, %v1041
        %v1044 = vrot.slane %v1002, 2
        %v1045 = vsel %vm238, %v1044, %v1043
        %v1046 = vrot.slane %v1003, 1
        %v1047 = vsel %vm241, %v1046, %v1045
        %v1050 = vmul.f32 %v201, %v1033
        %v1051 = vmul.f32 %v201, %v1047
        %v1052 = vmul.f32 %v205, %v1033
        %v1053 = vmul.f32 %v205, %v1047
        %v1054 = vrot.slane %v988, 1
        %v1055 = vsel %vm223, %v989, %v1054
        %v1056 = vrot.slane %v990, 7
        %v1057 = vsel %vm226, %v1056, %v1055
        %v1058 = vrot.slane %v991, 6
        %v1059 = vsel %vm229, %v1058, %v1057
        %v1060 = vrot.slane %v992, 5
        %v1061 = vsel %vm232, %v1060, %v1059
        %v1062 = vrot.slane %v993, 4
        %v1063 = vsel %vm235, %v1062, %v1061
        %v1064 = vrot.slane %v994, 3
        %v1065 = vsel %vm238, %v1064, %v1063
        %v1066 = vrot.slane %v995, 2
        %v1067 = vsel %vm241, %v1066, %v1065
        %v1068 = vrot.slane %v996, 1
        %v1069 = vsel %vm223, %v997, %v1068
        %v1070 = vrot.slane %v998, 7
        %v1071 = vsel %vm226, %v1070, %v1069
        %v1072 = vrot.slane %v999, 6
        %v1073 = vsel %vm229, %v1072, %v1071
        %v1074 = vrot.slane %v1000, 5
        %v1075 = vsel %vm232, %v1074, %v1073
        %v1076 = vrot.slane %v1001, 4
        %v1077 = vsel %vm235, %v1076, %v1075
        %v1078 = vrot.slane %v1002, 3
        %v1079 = vsel %vm238, %v1078, %v1077
        %v1080 = vrot.slane %v1003, 2
        %v1081 = vsel %vm241, %v1080, %v1079
        %v1084 = vmul.f32 %v266, %v1067
        %v1085 = vmul.f32 %v266, %v1081
        %v1086 = vmul.f32 %v270, %v1067
        %v1087 = vmul.f32 %v270, %v1081
        %v1088 = vadd.f32 %v1050, %v1084
        %v1089 = vadd.f32 %v1051, %v1085
        %v1090 = vadd.f32 %v1052, %v1086
        %v1091 = vadd.f32 %v1053, %v1087
        %v1092 = vrot.slane %v988, 2
        %v1093 = vrot.slane %v989, 1
        %v1094 = vsel %vm223, %v1093, %v1092
        %v1095 = vsel %vm226, %v990, %v1094
        %v1096 = vrot.slane %v991, 7
        %v1097 = vsel %vm229, %v1096, %v1095
        %v1098 = vrot.slane %v992, 6
        %v1099 = vsel %vm232, %v1098, %v1097
        %v1100 = vrot.slane %v993, 5
        %v1101 = vsel %vm235, %v1100, %v1099
        %v1102 = vrot.slane %v994, 4
        %v1103 = vsel %vm238, %v1102, %v1101
        %v1104 = vrot.slane %v995, 3
        %v1105 = vsel %vm241, %v1104, %v1103
        %v1106 = vrot.slane %v996, 2
        %v1107 = vrot.slane %v997, 1
        %v1108 = vsel %vm223, %v1107, %v1106
        %v1109 = vsel %vm226, %v998, %v1108
        %v1110 = vrot.slane %v999, 7
        %v1111 = vsel %vm229, %v1110, %v1109
        %v1112 = vrot.slane %v1000, 6
        %v1113 = vsel %vm232, %v1112, %v1111
        %v1114 = vrot.slane %v1001, 5
        %v1115 = vsel %vm235, %v1114, %v1113
        %v1116 = vrot.slane %v1002, 4
        %v1117 = vsel %vm238, %v1116, %v1115
        %v1118 = vrot.slane %v1003, 3
        %v1119 = vsel %vm241, %v1118, %v1117
        %v1122 = vmul.f32 %v312, %v1105
        %v1123 = vmul.f32 %v312, %v1119
        %v1124 = vmul.f32 %v316, %v1105
        %v1125 = vmul.f32 %v316, %v1119
        %v1126 = vadd.f32 %v1088, %v1122
        %v1127 = vadd.f32 %v1089, %v1123
        %v1128 = vadd.f32 %v1090, %v1124
        %v1129 = vadd.f32 %v1091, %v1125
        %v1130 = vrot.slane %v988, 3
        %v1131 = vrot.slane %v989, 2
        %v1132 = vsel %vm223, %v1131, %v1130
        %v1133 = vrot.slane %v990, 1
        %v1134 = vsel %vm226, %v1133, %v1132
        %v1135 = vsel %vm229, %v991, %v1134
        %v1136 = vrot.slane %v992, 7
        %v1137 = vsel %vm232, %v1136, %v1135
        %v1138 = vrot.slane %v993, 6
        %v1139 = vsel %vm235, %v1138, %v1137
        %v1140 = vrot.slane %v994, 5
        %v1141 = vsel %vm238, %v1140, %v1139
        %v1142 = vrot.slane %v995, 4
        %v1143 = vsel %vm241, %v1142, %v1141
        %v1144 = vrot.slane %v996, 3
        %v1145 = vrot.slane %v997, 2
        %v1146 = vsel %vm223, %v1145, %v1144
        %v1147 = vrot.slane %v998, 1
        %v1148 = vsel %vm226, %v1147, %v1146
        %v1149 = vsel %vm229, %v999, %v1148
        %v1150 = vrot.slane %v1000, 7
        %v1151 = vsel %vm232, %v1150, %v1149
        %v1152 = vrot.slane %v1001, 6
        %v1153 = vsel %vm235, %v1152, %v1151
        %v1154 = vrot.slane %v1002, 5
        %v1155 = vsel %vm238, %v1154, %v1153
        %v1156 = vrot.slane %v1003, 4
        %v1157 = vsel %vm241, %v1156, %v1155
        %v1160 = vmul.f32 %v358, %v1143
        %v1161 = vmul.f32 %v358, %v1157
        %v1162 = vmul.f32 %v362, %v1143
        %v1163 = vmul.f32 %v362, %v1157
        %v1164 = vadd.f32 %v1126, %v1160
        %v1165 = vadd.f32 %v1127, %v1161
        %v1166 = vadd.f32 %v1128, %v1162
        %v1167 = vadd.f32 %v1129, %v1163
        %v1168 = vrot.slane %v988, 4
        %v1169 = vrot.slane %v989, 3
        %v1170 = vsel %vm223, %v1169, %v1168
        %v1171 = vrot.slane %v990, 2
        %v1172 = vsel %vm226, %v1171, %v1170
        %v1173 = vrot.slane %v991, 1
        %v1174 = vsel %vm229, %v1173, %v1172
        %v1175 = vsel %vm232, %v992, %v1174
        %v1176 = vrot.slane %v993, 7
        %v1177 = vsel %vm235, %v1176, %v1175
        %v1178 = vrot.slane %v994, 6
        %v1179 = vsel %vm238, %v1178, %v1177
        %v1180 = vrot.slane %v995, 5
        %v1181 = vsel %vm241, %v1180, %v1179
        %v1182 = vrot.slane %v996, 4
        %v1183 = vrot.slane %v997, 3
        %v1184 = vsel %vm223, %v1183, %v1182
        %v1185 = vrot.slane %v998, 2
        %v1186 = vsel %vm226, %v1185, %v1184
        %v1187 = vrot.slane %v999, 1
        %v1188 = vsel %vm229, %v1187, %v1186
        %v1189 = vsel %vm232, %v1000, %v1188
        %v1190 = vrot.slane %v1001, 7
        %v1191 = vsel %vm235, %v1190, %v1189
        %v1192 = vrot.slane %v1002, 6
        %v1193 = vsel %vm238, %v1192, %v1191
        %v1194 = vrot.slane %v1003, 5
        %v1195 = vsel %vm241, %v1194, %v1193
        %v1198 = vmul.f32 %v404, %v1181
        %v1199 = vmul.f32 %v404, %v1195
        %v1200 = vmul.f32 %v408, %v1181
        %v1201 = vmul.f32 %v408, %v1195
        %v1202 = vadd.f32 %v1164, %v1198
        %v1203 = vadd.f32 %v1165, %v1199
        %v1204 = vadd.f32 %v1166, %v1200
        %v1205 = vadd.f32 %v1167, %v1201
        %v1206 = vrot.slane %v988, 5
        %v1207 = vrot.slane %v989, 4
        %v1208 = vsel %vm223, %v1207, %v1206
        %v1209 = vrot.slane %v990, 3
        %v1210 = vsel %vm226, %v1209, %v1208
        %v1211 = vrot.slane %v991, 2
        %v1212 = vsel %vm229, %v1211, %v1210
        %v1213 = vrot.slane %v992, 1
        %v1214 = vsel %vm232, %v1213, %v1212
        %v1215 = vsel %vm235, %v993, %v1214
        %v1216 = vrot.slane %v994, 7
        %v1217 = vsel %vm238, %v1216, %v1215
        %v1218 = vrot.slane %v995, 6
        %v1219 = vsel %vm241, %v1218, %v1217
        %v1220 = vrot.slane %v996, 5
        %v1221 = vrot.slane %v997, 4
        %v1222 = vsel %vm223, %v1221, %v1220
        %v1223 = vrot.slane %v998, 3
        %v1224 = vsel %vm226, %v1223, %v1222
        %v1225 = vrot.slane %v999, 2
        %v1226 = vsel %vm229, %v1225, %v1224
        %v1227 = vrot.slane %v1000, 1
        %v1228 = vsel %vm232, %v1227, %v1226
        %v1229 = vsel %vm235, %v1001, %v1228
        %v1230 = vrot.slane %v1002, 7
        %v1231 = vsel %vm238, %v1230, %v1229
        %v1232 = vrot.slane %v1003, 6
        %v1233 = vsel %vm241, %v1232, %v1231
        %v1236 = vmul.f32 %v450, %v1219
        %v1237 = vmul.f32 %v450, %v1233
        %v1238 = vmul.f32 %v454, %v1219
        %v1239 = vmul.f32 %v454, %v1233
        %v1240 = vadd.f32 %v1202, %v1236
        %v1241 = vadd.f32 %v1203, %v1237
        %v1242 = vadd.f32 %v1204, %v1238
        %v1243 = vadd.f32 %v1205, %v1239
        %v1244 = vrot.slane %v988, 6
        %v1245 = vrot.slane %v989, 5
        %v1246 = vsel %vm223, %v1245, %v1244
        %v1247 = vrot.slane %v990, 4
        %v1248 = vsel %vm226, %v1247, %v1246
        %v1249 = vrot.slane %v991, 3
        %v1250 = vsel %vm229, %v1249, %v1248
        %v1251 = vrot.slane %v992, 2
        %v1252 = vsel %vm232, %v1251, %v1250
        %v1253 = vrot.slane %v993, 1
        %v1254 = vsel %vm235, %v1253, %v1252
        %v1255 = vsel %vm238, %v994, %v1254
        %v1256 = vrot.slane %v995, 7
        %v1257 = vsel %vm241, %v1256, %v1255
        %v1258 = vrot.slane %v996, 6
        %v1259 = vrot.slane %v997, 5
        %v1260 = vsel %vm223, %v1259, %v1258
        %v1261 = vrot.slane %v998, 4
        %v1262 = vsel %vm226, %v1261, %v1260
        %v1263 = vrot.slane %v999, 3
        %v1264 = vsel %vm229, %v1263, %v1262
        %v1265 = vrot.slane %v1000, 2
        %v1266 = vsel %vm232, %v1265, %v1264
        %v1267 = vrot.slane %v1001, 1
        %v1268 = vsel %vm235, %v1267, %v1266
        %v1269 = vsel %vm238, %v1002, %v1268
        %v1270 = vrot.slane %v1003, 7
        %v1271 = vsel %vm241, %v1270, %v1269
        %v1274 = vmul.f32 %v496, %v1257
        %v1275 = vmul.f32 %v496, %v1271
        %v1276 = vmul.f32 %v500, %v1257
        %v1277 = vmul.f32 %v500, %v1271
        %v1278 = vadd.f32 %v1240, %v1274
        %v1279 = vadd.f32 %v1241, %v1275
        %v1280 = vadd.f32 %v1242, %v1276
        %v1281 = vadd.f32 %v1243, %v1277
        %v1282 = vrot.slane %v988, 7
        %v1283 = vrot.slane %v989, 6
        %v1284 = vsel %vm223, %v1283, %v1282
        %v1285 = vrot.slane %v990, 5
        %v1286 = vsel %vm226, %v1285, %v1284
        %v1287 = vrot.slane %v991, 4
        %v1288 = vsel %vm229, %v1287, %v1286
        %v1289 = vrot.slane %v992, 3
        %v1290 = vsel %vm232, %v1289, %v1288
        %v1291 = vrot.slane %v993, 2
        %v1292 = vsel %vm235, %v1291, %v1290
        %v1293 = vrot.slane %v994, 1
        %v1294 = vsel %vm238, %v1293, %v1292
        %v1295 = vsel %vm241, %v995, %v1294
        %v1296 = vrot.slane %v996, 7
        %v1297 = vrot.slane %v997, 6
        %v1298 = vsel %vm223, %v1297, %v1296
        %v1299 = vrot.slane %v998, 5
        %v1300 = vsel %vm226, %v1299, %v1298
        %v1301 = vrot.slane %v999, 4
        %v1302 = vsel %vm229, %v1301, %v1300
        %v1303 = vrot.slane %v1000, 3
        %v1304 = vsel %vm232, %v1303, %v1302
        %v1305 = vrot.slane %v1001, 2
        %v1306 = vsel %vm235, %v1305, %v1304
        %v1307 = vrot.slane %v1002, 1
        %v1308 = vsel %vm238, %v1307, %v1306
        %v1309 = vsel %vm241, %v1003, %v1308
        %v1312 = vmul.f32 %v542, %v1295
        %v1313 = vmul.f32 %v542, %v1309
        %v1314 = vmul.f32 %v546, %v1295
        %v1315 = vmul.f32 %v546, %v1309
        %v1316 = vadd.f32 %v1278, %v1312
        %v1317 = vadd.f32 %v1279, %v1313
        %v1318 = vadd.f32 %v1280, %v1314
        %v1319 = vadd.f32 %v1281, %v1315
        %1320 = vadd.xlane.f32.xlu0 %v1316
        %v1321 = vpop.xlane.xlu0 %1320
        %1322 = vadd.xlane.f32.xlu0 %v1317
        %v1323 = vpop.xlane.xlu0 %1322
        %1324 = vadd.xlane.f32.xlu0 %v1318
        %v1325 = vpop.xlane.xlu0 %1324
        %1326 = vadd.xlane.f32.xlu0 %v1319
        %v1327 = vpop.xlane.xlu0 %1326
        %v1328 = vmul.f32 %v1321, 0.0078125
        %v1329 = vmul.f32 %v1323, 0.0078125
        %v1330 = vmul.f32 %v1325, 0.0078125
        %v1331 = vmul.f32 %v1327, 0.0078125
        %v1332 = vmul.f32 %v1328, %v1328
        %v1333 = vmul.f32 %v1329, %v1329
        %v1334 = vmul.f32 %v1330, %v1330
        %v1335 = vmul.f32 %v1331, %v1331
        %v1340 = vlaneseq
        %v1341 = vshrl.u32 %v1340, 7
        %v1342 = vsub.s32 %v606, %v1341
        %v1343 = vrot.slane %v1332, %v1342
        %v1344 = vlaneseq
        %v1345 = vshrl.u32 %v1344, 7
        %v1346 = vsub.s32 %v611, %v1345
        %v1347 = vrot.slane %v1333, %v1346
        %v1348 = vsel %vm616, %v1347, %v1343
        %v1349 = vlaneseq
        %v1350 = vshrl.u32 %v1349, 7
        %v1351 = vsub.s32 %v606, %v1350
        %v1352 = vrot.slane %v1334, %v1351
        %v1353 = vlaneseq
        %v1354 = vshrl.u32 %v1353, 7
        %v1355 = vsub.s32 %v611, %v1354
        %v1356 = vrot.slane %v1335, %v1355
        %v1357 = vsel %vm616, %v1356, %v1352
        %v1358 = vsel %vm223, %v1357, %v1348
        %v1360 = vsel %vm629, %v1358, 0.0
        %1361 = vadd.xlane.f32.xlu0 %v1360
        %v1362 = vpop.xlane.xlu0 %1361
        %v1363 = vrsqrt.pop %v1362
        %v1364 = vmul.f32 %v1362, %v1363
        %vm1365 = vcmp.eq.f32.partialorder %v1362, inf
        %v1366 = vsel %vm1365, %v1362, %v1364
        %vm1367 = vcmp.eq.f32.partialorder %v1362, 0.0
        %v1368 = vand.u32 %v1362, 2147483648
        %v1369 = vsel %vm1367, %v1368, %v1366
        %v1371 = vlaneseq
        %v1372 = vshrl.u32 %v1371, 7
        %v1373 = vsub.s32 0, %v1372
        %v1374 = vrot.slane %v1369, %v1373
        %v1375 = vlaneseq
        %v1376 = vshrl.u32 %v1375, 7
        %v1377 = vsub.s32 1, %v1376
        %v1378 = vrot.slane %v1369, %v1377
        %v1381 = vmul.f32 %v1328, %v1374
        %v1382 = vmul.f32 %v1329, %v1374
        %v1383 = vmul.f32 %v1330, %v1378
        %v1384 = vmul.f32 %v1331, %v1378
        %v1385 = vadd.f32 %v1362, 1.0
        %v1386 = vrcp.pop %v1385
        %v1388 = vlaneseq
        %v1389 = vshrl.u32 %v1388, 7
        %v1390 = vsub.s32 0, %v1389
        %v1391 = vrot.slane %v1386, %v1390
        %v1392 = vlaneseq
        %v1393 = vshrl.u32 %v1392, 7
        %v1394 = vsub.s32 1, %v1393
        %v1395 = vrot.slane %v1386, %v1394
        %v1398 = vmul.f32 %v1381, %v1391
        %v1399 = vmul.f32 %v1382, %v1391
        %v1400 = vmul.f32 %v1383, %v1395
        %v1401 = vmul.f32 %v1384, %v1395
        %1403 = vset.pattern.permute.xlu0 0
        %1404 = vperm.xlu0 %1403, %v1398
        %v1405 = vpop.permute.xlu0 %1404
        %1408 = vset.pattern.permute.xlu0 0
        %1409 = vperm.xlu0 %1408, %v1399
        %v1410 = vpop.permute.xlu0 %1409
        %1413 = vset.pattern.permute.xlu0 0
        %1414 = vperm.xlu0 %1413, %v1400
        %v1415 = vpop.permute.xlu0 %1414
        %1418 = vset.pattern.permute.xlu0 0
        %1419 = vperm.xlu0 %1418, %v1401
        %v1420 = vpop.permute.xlu0 %1419
        %v1422 = vmul.f32 %v1316, %v1405
        %v1423 = vmul.f32 %v1317, %v1410
        %v1424 = vmul.f32 %v1318, %v1415
        %v1425 = vmul.f32 %v1319, %v1420
        %v1426 = vadd.f32 %v1422, %v1423
        %v1427 = vrot.slane %v1426, 4
        %v1428 = vadd.f32 %v1426, %v1427
        %v1429 = vrot.slane %v1428, 2
        %v1430 = vadd.f32 %v1428, %v1429
        %v1431 = vrot.slane %v1430, 1
        %v1432 = vadd.f32 %v1430, %v1431
        %v1433 = vadd.f32 %v1424, %v1425
        %v1434 = vrot.slane %v1433, 4
        %v1435 = vadd.f32 %v1433, %v1434
        %v1436 = vrot.slane %v1435, 2
        %v1437 = vadd.f32 %v1435, %v1436
        %v1438 = vrot.slane %v1437, 1
        %v1439 = vadd.f32 %v1437, %v1438
        %1440 = vmax.xlane.f32.xlu0 %v1432
        %v1441 = vpop.xlane.xlu0 %1440
        %1442 = vmax.xlane.f32.xlu0 %v1439
        %v1443 = vpop.xlane.xlu0 %1442
        %v1444 = vsub.f32 %v1432, %v1441
        %v1445 = vsub.f32 %v1439, %v1443
        %v1446 = vmul.f32 %v1444, 1.442695
        %v1447 = vpow.pop %v1446
        %v1448 = vmul.f32 %v1445, 1.442695
        %v1449 = vpow.pop %v1448
        %1450 = vadd.xlane.f32.xlu0 %v1447
        %v1451 = vpop.xlane.xlu0 %1450
        %1452 = vadd.xlane.f32.xlu0 %v1449
        %v1453 = vpop.xlane.xlu0 %1452
        %v1454 = vrcp.pop %v1451
        %v1455 = vrcp.pop %v1453
        %v1456 = vmul.f32 %v1447, %v1454
        %v1457 = vmul.f32 %v1449, %v1455
        %v1458 = vmul.f32 %v1456, %v1316
        %v1459 = vmul.f32 %v1456, %v1317
        %v1460 = vmul.f32 %v1457, %v1318
        %v1461 = vmul.f32 %v1457, %v1319
        %1462 = vadd.xlane.f32.xlu0 %v1458
        %v1463 = vpop.xlane.xlu0 %1462
        %1464 = vadd.xlane.f32.xlu0 %v1459
        %v1465 = vpop.xlane.xlu0 %1464
        %1466 = vadd.xlane.f32.xlu0 %v1460
        %v1467 = vpop.xlane.xlu0 %1466
        %1468 = vadd.xlane.f32.xlu0 %v1461
        %v1469 = vpop.xlane.xlu0 %1468
        %v1470 = vmul.f32 %v1463, %v1463
        %v1471 = vmul.f32 %v1465, %v1465
        %v1472 = vmul.f32 %v1467, %v1467
        %v1473 = vmul.f32 %v1469, %v1469
        %v1478 = vlaneseq
        %v1479 = vshrl.u32 %v1478, 7
        %v1480 = vsub.s32 %v606, %v1479
        %v1481 = vrot.slane %v1470, %v1480
        %v1482 = vlaneseq
        %v1483 = vshrl.u32 %v1482, 7
        %v1484 = vsub.s32 %v611, %v1483
        %v1485 = vrot.slane %v1471, %v1484
        %v1486 = vsel %vm616, %v1485, %v1481
        %v1487 = vlaneseq
        %v1488 = vshrl.u32 %v1487, 7
        %v1489 = vsub.s32 %v606, %v1488
        %v1490 = vrot.slane %v1472, %v1489
        %v1491 = vlaneseq
        %v1492 = vshrl.u32 %v1491, 7
        %v1493 = vsub.s32 %v611, %v1492
        %v1494 = vrot.slane %v1473, %v1493
        %v1495 = vsel %vm616, %v1494, %v1490
        %v1496 = vsel %vm223, %v1495, %v1486
        %v1498 = vsel %vm629, %v1496, 0.0
        %1499 = vadd.xlane.f32.xlu0 %v1498
        %v1500 = vpop.xlane.xlu0 %1499
        %v1501 = vrsqrt.pop %v1500
        %v1502 = vmul.f32 %v1500, %v1501
        %vm1503 = vcmp.eq.f32.partialorder %v1500, inf
        %v1504 = vsel %vm1503, %v1500, %v1502
        %vm1505 = vcmp.eq.f32.partialorder %v1500, 0.0
        %v1506 = vand.u32 %v1500, 2147483648
        %v1507 = vsel %vm1505, %v1506, %v1504
        %v1509 = vlaneseq
        %v1510 = vshrl.u32 %v1509, 7
        %v1511 = vsub.s32 0, %v1510
        %v1512 = vrot.slane %v1507, %v1511
        %v1513 = vlaneseq
        %v1514 = vshrl.u32 %v1513, 7
        %v1515 = vsub.s32 1, %v1514
        %v1516 = vrot.slane %v1507, %v1515
        %v1519 = vmul.f32 %v1463, %v1512
        %v1520 = vmul.f32 %v1465, %v1512
        %v1521 = vmul.f32 %v1467, %v1516
        %v1522 = vmul.f32 %v1469, %v1516
        %v1523 = vadd.f32 %v1500, 1.0
        %v1524 = vrcp.pop %v1523
        %v1526 = vlaneseq
        %v1527 = vshrl.u32 %v1526, 7
        %v1528 = vsub.s32 0, %v1527
        %v1529 = vrot.slane %v1524, %v1528
        %v1530 = vlaneseq
        %v1531 = vshrl.u32 %v1530, 7
        %v1532 = vsub.s32 1, %v1531
        %v1533 = vrot.slane %v1524, %v1532
        %v1536 = vmul.f32 %v1519, %v1529
        %v1537 = vmul.f32 %v1520, %v1529
        %v1538 = vmul.f32 %v1521, %v1533
        %v1539 = vmul.f32 %v1522, %v1533
        %1541 = vset.pattern.permute.xlu0 0
        %1542 = vperm.xlu0 %1541, %v1536
        %v1543 = vpop.permute.xlu0 %1542
        %1546 = vset.pattern.permute.xlu0 0
        %1547 = vperm.xlu0 %1546, %v1537
        %v1548 = vpop.permute.xlu0 %1547
        %1551 = vset.pattern.permute.xlu0 0
        %1552 = vperm.xlu0 %1551, %v1538
        %v1553 = vpop.permute.xlu0 %1552
        %1556 = vset.pattern.permute.xlu0 0
        %1557 = vperm.xlu0 %1556, %v1539
        %v1558 = vpop.permute.xlu0 %1557
        %v1560 = vmul.f32 %v1316, %v1543
        %v1561 = vmul.f32 %v1317, %v1548
        %v1562 = vmul.f32 %v1318, %v1553
        %v1563 = vmul.f32 %v1319, %v1558
        %v1564 = vadd.f32 %v1560, %v1561
        %v1565 = vrot.slane %v1564, 4
        %v1566 = vadd.f32 %v1564, %v1565
        %v1567 = vrot.slane %v1566, 2
        %v1568 = vadd.f32 %v1566, %v1567
        %v1569 = vrot.slane %v1568, 1
        %v1570 = vadd.f32 %v1568, %v1569
        %v1571 = vadd.f32 %v1562, %v1563
        %v1572 = vrot.slane %v1571, 4
        %v1573 = vadd.f32 %v1571, %v1572
        %v1574 = vrot.slane %v1573, 2
        %v1575 = vadd.f32 %v1573, %v1574
        %v1576 = vrot.slane %v1575, 1
        %v1577 = vadd.f32 %v1575, %v1576
        %v1578 = vadd.f32 %v1432, %v1570
        %v1579 = vadd.f32 %v1439, %v1577
        %1580 = vmax.xlane.f32.xlu0 %v1578
        %v1581 = vpop.xlane.xlu0 %1580
        %1582 = vmax.xlane.f32.xlu0 %v1579
        %v1583 = vpop.xlane.xlu0 %1582
        %v1584 = vsub.f32 %v1578, %v1581
        %v1585 = vsub.f32 %v1579, %v1583
        %v1586 = vmul.f32 %v1584, 1.442695
        %v1587 = vpow.pop %v1586
        %v1588 = vmul.f32 %v1585, 1.442695
        %v1589 = vpow.pop %v1588
        %1590 = vadd.xlane.f32.xlu0 %v1587
        %v1591 = vpop.xlane.xlu0 %1590
        %1592 = vadd.xlane.f32.xlu0 %v1589
        %v1593 = vpop.xlane.xlu0 %1592
        %v1594 = vrcp.pop %v1591
        %v1595 = vrcp.pop %v1593
        %v1596 = vmul.f32 %v1587, %v1594
        %v1597 = vmul.f32 %v1589, %v1595
        %v1598 = vmul.f32 %v1596, %v1316
        %v1599 = vmul.f32 %v1596, %v1317
        %v1600 = vmul.f32 %v1597, %v1318
        %v1601 = vmul.f32 %v1597, %v1319
        %1602 = vadd.xlane.f32.xlu0 %v1598
        %v1603 = vpop.xlane.xlu0 %1602
        %1604 = vadd.xlane.f32.xlu0 %v1599
        %v1605 = vpop.xlane.xlu0 %1604
        %1606 = vadd.xlane.f32.xlu0 %v1600
        %v1607 = vpop.xlane.xlu0 %1606
        %1608 = vadd.xlane.f32.xlu0 %v1601
        %v1609 = vpop.xlane.xlu0 %1608
        %v1610 = vmul.f32 %v1603, %v1603
        %v1611 = vmul.f32 %v1605, %v1605
        %v1612 = vmul.f32 %v1607, %v1607
        %v1613 = vmul.f32 %v1609, %v1609
        %v1618 = vlaneseq
        %v1619 = vshrl.u32 %v1618, 7
        %v1620 = vsub.s32 %v606, %v1619
        %v1621 = vrot.slane %v1610, %v1620
        %v1622 = vlaneseq
        %v1623 = vshrl.u32 %v1622, 7
        %v1624 = vsub.s32 %v611, %v1623
        %v1625 = vrot.slane %v1611, %v1624
        %v1626 = vsel %vm616, %v1625, %v1621
        %v1627 = vlaneseq
        %v1628 = vshrl.u32 %v1627, 7
        %v1629 = vsub.s32 %v606, %v1628
        %v1630 = vrot.slane %v1612, %v1629
        %v1631 = vlaneseq
        %v1632 = vshrl.u32 %v1631, 7
        %v1633 = vsub.s32 %v611, %v1632
        %v1634 = vrot.slane %v1613, %v1633
        %v1635 = vsel %vm616, %v1634, %v1630
        %v1636 = vsel %vm223, %v1635, %v1626
        %v1638 = vsel %vm629, %v1636, 0.0
        %1639 = vadd.xlane.f32.xlu0 %v1638
        %v1640 = vpop.xlane.xlu0 %1639
        %v1641 = vrsqrt.pop %v1640
        %v1642 = vmul.f32 %v1640, %v1641
        %vm1643 = vcmp.eq.f32.partialorder %v1640, inf
        %v1644 = vsel %vm1643, %v1640, %v1642
        %vm1645 = vcmp.eq.f32.partialorder %v1640, 0.0
        %v1646 = vand.u32 %v1640, 2147483648
        %v1647 = vsel %vm1645, %v1646, %v1644
        %v1649 = vlaneseq
        %v1650 = vshrl.u32 %v1649, 7
        %v1651 = vsub.s32 0, %v1650
        %v1652 = vrot.slane %v1647, %v1651
        %v1653 = vlaneseq
        %v1654 = vshrl.u32 %v1653, 7
        %v1655 = vsub.s32 1, %v1654
        %v1656 = vrot.slane %v1647, %v1655
        %v1659 = vmul.f32 %v1603, %v1652
        %v1660 = vmul.f32 %v1605, %v1652
        %v1661 = vmul.f32 %v1607, %v1656
        %v1662 = vmul.f32 %v1609, %v1656
        %v1663 = vadd.f32 %v1640, 1.0
        %v1664 = vrcp.pop %v1663
        %v1666 = vlaneseq
        %v1667 = vshrl.u32 %v1666, 7
        %v1668 = vsub.s32 0, %v1667
        %v1669 = vrot.slane %v1664, %v1668
        %v1670 = vlaneseq
        %v1671 = vshrl.u32 %v1670, 7
        %v1672 = vsub.s32 1, %v1671
        %v1673 = vrot.slane %v1664, %v1672
        %v1676 = vmul.f32 %v1659, %v1669
        %v1677 = vmul.f32 %v1660, %v1669
        %v1678 = vmul.f32 %v1661, %v1673
        %v1679 = vmul.f32 %v1662, %v1673
        %1684 = vset.pattern.permute.xlu0 0
        %1685 = vperm.xlu0 %1684, %v1676
        %v1686 = vpop.permute.xlu0 %1685
        %1687 = vset.pattern.permute.xlu0 0
        %1688 = vperm.xlu0 %1687, %v1677
        %v1689 = vpop.permute.xlu0 %1688
        %1690 = vset.pattern.permute.xlu0 0
        %1691 = vperm.xlu0 %1690, %v1678
        %v1692 = vpop.permute.xlu0 %1691
        %1693 = vset.pattern.permute.xlu0 0
        %1694 = vperm.xlu0 %1693, %v1679
        %v1695 = vpop.permute.xlu0 %1694
        %v1696 = vlaneseq
        %v1697 = vshrl.u32 %v1696, 7
        %v1698 = vsub.s32 %v606, %v1697
        %v1699 = vrot.slane %v1686, %v1698
        %v1700 = vlaneseq
        %v1701 = vshrl.u32 %v1700, 7
        %v1702 = vsub.s32 %v611, %v1701
        %v1703 = vrot.slane %v1689, %v1702
        %v1704 = vsel %vm616, %v1703, %v1699
        %v1705 = vlaneseq
        %v1706 = vshrl.u32 %v1705, 7
        %v1707 = vsub.s32 %v606, %v1706
        %v1708 = vrot.slane %v1692, %v1707
        %v1709 = vlaneseq
        %v1710 = vshrl.u32 %v1709, 7
        %v1711 = vsub.s32 %v611, %v1710
        %v1712 = vrot.slane %v1695, %v1711
        %v1713 = vsel %vm616, %v1712, %v1708
        %v1714 = vsel %vm223, %v1713, %v1704
        %s1716 = scalar_lea.vmem %s177, 2 [#allocation7]
        %1717 = vst.msk [vmem:[%s1716] sm:$0x3] %vm629, %v1714
        %s1718 = sand.u32 %s75, 1
        %s1719 = scalar_lea.sflag [#allocation4], %s1718
        %s1720 = sand.u32 %s75, 1
        %s1721 = smul.addr %s1720, 4
        %s1722 = scalar_lea.vmem [#allocation7], %s1721
        // Predicated region
        $region37: #{capsule_layer.1} parent=27 // pred_check
          %p1723 = pneg %p85
        $region38: #{capsule_layer.1} parent=27 // pred_check_branch
          %1725 = sbr.rel (%p1723) target = $region40
        $region39: #{capsule_layer.1} parent=27 // pred_region
          %s1726 = smul.u32 2, %s20
          %s1728 = ssub.s32 64, 64
          %1729 = vsyncadd %s1719, %s1728
          %s1730 = smul.addr %s1726, 32
          %s1731 = scalar_lea.hbm %s2, %s1730
          %s1732 = sshll.u32 %s1722, 4
          %s1733 = int_to_ptr.vmem [resolvable:$true] %s1732
          %1738 = dma.vmem_to_hbm [thread:$0]  %s1733, 64, %s1731, %s1719, 32, 32, 2
        $region40: #{capsule_layer.1} parent=27 // pred_fallthru
          _
      $region28: #{capsule_layer.1} parent=5 // pred_fallthru
        _
      %p1739 = scmp.le.s32.totalorder 2, %s15
      // Predicated region
      $region41: #{capsule_layer.1} parent=5 // pred_check
        %p1740 = pneg %p1739
      $region42: #{capsule_layer.1} parent=5 // pred_check_branch
        %1742 = sbr.rel (%p1740) target = $region44
      $region43: #{capsule_layer.1} parent=5 // pred_region
        %s1743 = ssub.s32 %s15, 2
        // Predicated region
        $region45: #{capsule_layer.1} parent=43 // pred_check
          %p1744 = pneg %p91
        $region46: #{capsule_layer.1} parent=43 // pred_check_branch
          %1746 = sbr.rel (%p1744) target = $region48
        $region47: #{capsule_layer.1} parent=43 // pred_region
          %s1747 = sand.u32 %s76, 1
          %s1748 = scalar_lea.sflag [#allocation4], %s1747
          %s1749 = sand.u32 %s76, 1
          %s1750 = smul.addr %s1749, 4
          %s1751 = scalar_lea.vmem [#allocation7], %s1750
          %1752 = dma.done %s1748, 64
        $region48: #{capsule_layer.1} parent=43 // pred_fallthru
          _
      $region44: #{capsule_layer.1} parent=5 // pred_fallthru
        _
    $region6: #{capsule_layer.1} parent=1 // loop_footer
      %s19 = sadd.s32 1, %s15
    $region7: #{capsule_layer.1} parent=1 // loop_footer_branch
      %14 = sbr.rel target = $region3
    $region8: #{capsule_layer.1} parent=1 // loop_exit
      _
    %1753 = vsyncpa [#allocation3], 1
    %s1754 = scalar_lea.sflag [#allocation3], 1
    %1755 = vsyncpa %s1754, 1
    %1756 = vsyncpa [#allocation6], 1
    %s1757 = scalar_lea.sflag [#allocation6], 1
    %1758 = vsyncpa %s1757, 1
    %1759 = vsyncpa [#allocation4], 1
    %s1760 = scalar_lea.sflag [#allocation4], 1
    %1761 = vsyncpa %s1760, 1

</llo_original>
